<compile_context>
chip_gen: v5e
topology: v5e:2x2
jax: 0.10.0
libtpu: 0.0.40
codegen_flags: <defaults>
</compile_context>

<pallas_src>
import math
import numpy as np
import jax
import jax.numpy as jnp
from jax import lax
from jax.experimental import pallas as pl
from jax.experimental.pallas import tpu as pltpu


# ----------------------------------------------------------------------------
# Parameter construction (mirrors _generate_hold_kernel; pure numpy glue)
# ----------------------------------------------------------------------------
def _generate_hold_kernel_np(zoh_kernel_size, order):
    kh, kw = zoh_kernel_size
    zoh = np.ones((kh, kw), np.float32)
    k = zoh.copy()
    for _ in range(order):
        # torch code passes ((kw+1)//2, (kh+1)//2) as (padH, padW) — replicate exactly
        pad_h = (kw + 1) // 2
        pad_w = (kh + 1) // 2
        kp = np.pad(k, ((pad_h, pad_h), (pad_w, pad_w)))
        oh, ow = kp.shape[0] - kh + 1, kp.shape[1] - kw + 1
        out = np.zeros((oh, ow), np.float32)
        for i in range(oh):
            for j in range(ow):
                out[i, j] = np.sum(kp[i:i + kh, j:j + kw] * zoh)
        k = out
    return k


# ----------------------------------------------------------------------------
# Fused kernel: zero-order hold (2x2 ones) -> 3x3 stride-2 conv (+ folded bias)
# ----------------------------------------------------------------------------
def _make_fused_kernel(Ho, Wo, C, Cout, out_dtype, im2col):
    KH, KW = 3, 3
    NT = (((1,), (1,)), ((), ()))      # contract last dim of both operands (A @ B^T)

    def kernel(xpar_ref, w_ref, bmap_ref, out_ref, y_sc):
        f32 = jnp.float32

        # ---- stage 1: hold conv (order-0 => 2x2 all-ones), bias folded post-matmul.
        # y_sc[a*2+b, p, q, :] = ypad[2p+a, 2q+b, :], ypad = conv-zero-padded hold
        # output.  Only the thin halo that the conv's zero padding reads is zeroed;
        # everything else that is read is overwritten below.  Megacore-safe (done
        # every step), and ~100x fewer stores than zeroing the whole scratch.
        y_sc[0, 0:1, :, :] = jnp.zeros((1, Wo + 1, C), f32)
        y_sc[0, :, 0:1, :] = jnp.zeros((Ho + 1, 1, C), f32)
        y_sc[1, 0:1, :, :] = jnp.zeros((1, Wo + 1, C), f32)
        y_sc[2, :, 0:1, :] = jnp.zeros((Ho + 1, 1, C), f32)

        # Input parity planes: xpar_ref[a*2+b][p, q, c] = xpad[2p+a, 2q+b, c] where
        # xpad is x zero-padded by 1 on each spatial side.  All reads below are
        # ref-window loads (no full-plane temporaries kept live).
        # plane (0,0): rows 1..Ho, cols 1..Wo
        y_sc[0, 1:Ho + 1, 1:Wo + 1, :] = (
            xpar_ref[0, 1:Ho + 1, 1:Wo + 1, :].astype(f32)
            + xpar_ref[1, 1:Ho + 1, 0:Wo, :].astype(f32)
            + xpar_ref[2, 0:Ho, 1:Wo + 1, :].astype(f32)
            + xpar_ref[3, 0:Ho, 0:Wo, :].astype(f32))
        # plane (0,1): rows 1..Ho, cols 0..Wo-1
        y_sc[1, 1:Ho + 1, 0:Wo, :] = (
            xpar_ref[0, 1:Ho + 1, 0:Wo, :].astype(f32)
            + xpar_ref[1, 1:Ho + 1, 0:Wo, :].astype(f32)
            + xpar_ref[2, 0:Ho, 0:Wo, :].astype(f32)
            + xpar_ref[3, 0:Ho, 0:Wo, :].astype(f32))
        # plane (1,0): rows 0..Ho-1, cols 1..Wo
        y_sc[2, 0:Ho, 1:Wo + 1, :] = (
            xpar_ref[0, 0:Ho, 1:Wo + 1, :].astype(f32)
            + xpar_ref[1, 0:Ho, 0:Wo, :].astype(f32)
            + xpar_ref[2, 0:Ho, 1:Wo + 1, :].astype(f32)
            + xpar_ref[3, 0:Ho, 0:Wo, :].astype(f32))
        # plane (1,1): rows 0..Ho-1, cols 0..Wo-1
        y_sc[3, 0:Ho, 0:Wo, :] = (
            xpar_ref[0, 0:Ho, 0:Wo, :].astype(f32)
            + xpar_ref[1, 0:Ho, 0:Wo, :].astype(f32)
            + xpar_ref[2, 0:Ho, 0:Wo, :].astype(f32)
            + xpar_ref[3, 0:Ho, 0:Wo, :].astype(f32))

        # ---- stage 2: 3x3 stride-2 conv straight from the VMEM scratch -----------
        # Conv tap (kh, kw) reads plane (kh%2, kw%2) at window offset (kh//2, kw//2):
        # every tap is a contiguous (Ho, Wo, C) window.
        taps = []
        for kh in range(KH):
            for kw in range(KW):
                plane = (kh % 2) * 2 + (kw % 2)
                r0, c0 = kh // 2, kw // 2
                t = y_sc[plane, r0:r0 + Ho, c0:c0 + Wo, :]       # (Ho, Wo, C)
                taps.append(t.reshape(Ho * Wo, C))

        w = w_ref[...].astype(f32)                               # (Cout, KH*KW*C)
        acc = bmap_ref[...].astype(f32)                          # (Cout, Ho*Wo) = conv(hold bias)
        if im2col:
            # Single MXU contraction with K = KH*KW*C (only when C is lane-friendly).
            patches = jnp.concatenate(taps, axis=-1)             # (Ho*Wo, KH*KW*C)
            acc = acc + lax.dot_general(w, patches, NT,
                                        preferred_element_type=jnp.float32)
        else:
            # 9 shallow NT dots accumulated in f32 (avoids a lane-dim concat when
            # C is not a multiple of 128).
            for t_idx, tap in enumerate(taps):
                acc = acc + lax.dot_general(
                    w[:, t_idx * C:(t_idx + 1) * C], tap, NT,
                    preferred_element_type=jnp.float32)

        # Lane-dense store: last dim is Ho*Wo (spatial), not Cout.
        out_ref[0] = acc.astype(out_dtype)                       # (Cout, Ho*Wo)

    return kernel


# ----------------------------------------------------------------------------
# Wrapper: layout glue + fused pallas_call
# ----------------------------------------------------------------------------
def _round_up(v, m):
    return -(-v // m) * m


def _padded_tile_bytes(shape, dtype):
    """VMEM bytes of one buffer with dtype-aware (sublane, lane) tile padding."""
    item = np.dtype(dtype).itemsize
    if len(shape) == 0:
        return item
    if len(shape) == 1:
        return _round_up(shape[0], 128) * item
    sub = max(8, 32 // item)                 # f32: 8, bf16: 16, int8/fp8: 32
    lead = int(np.prod(shape[:-2], dtype=np.int64)) if len(shape) > 2 else 1
    return lead * _round_up(shape[-2], sub) * _round_up(shape[-1], 128) * item


def downsampling2d_apply(x_nchw, hold_kernel_2d, hold_bias, conv_weight_oihw,
                         stride, padding, *, im2col=None):
    """DownSampling2d.forward (hold_first / bias_first) as one fused Pallas kernel."""
    N, C, H, W = x_nchw.shape
    Cout, Cin, Kh, Kw = conv_weight_oihw.shape
    hold_k = np.asarray(hold_kernel_2d, np.float32)

    # Configuration the fused parity-plane algebra was derived for (== the module's
    # DownSampling2d(kernel_size=3, stride=2, padding=1, order=0) instantiation).
    assert Cin == C
    assert tuple(stride) == (2, 2) and (Kh, Kw) == (3, 3) and tuple(padding) == (1, 1), (
        "fused kernel supports kernel_size=3, stride=2, padding=1")
    assert hold_k.shape == (2, 2) and np.allclose(hold_k, 1.0), (
        "fused kernel supports order=0 (2x2 all-ones hold kernel)")
    assert H % 2 == 0 and W % 2 == 0, "fused kernel requires even H, W"

    Ho, Wo = H // 2, W // 2
    Hh, Wh = Ho + 1, Wo + 1
    dtype = np.dtype(x_nchw.dtype)
    isz = dtype.itemsize

    # Explicit capability gate (replaces the old try/except): the lane-dim concat
    # only pays off when the channel dim fills lanes.
    if im2col is None:
        im2col = (C % 128 == 0)

    # ---- input re-layout: ONE pad + transpose pass (parity split in NCHW order) ---
    # xpar[n*4 + a*2 + b, p, q, c] = xpad[n, c, 2p+a, 2q+b].  (top,left)=1 is the
    # hold conv's asymmetric padding; (bottom,right)=1 only makes the four parity
    # planes share one shape (those entries are zero and read as zero).
    xpad = jnp.pad(x_nchw, ((0, 0), (0, 0), (1, 1), (1, 1)))       # (N, C, H+2, W+2)
    xpar = (xpad.reshape(N, C, Hh, 2, Wh, 2)
                .transpose(0, 3, 5, 2, 4, 1)                       # (N, 2, 2, Hh, Wh, C)
                .reshape(N * 4, Hh, Wh, C))

    # conv weight -> (Cout, Kh*Kw*Cin), K ordered (kh, kw, ci) to match the taps.
    w_t = jnp.transpose(conv_weight_oihw, (0, 2, 3, 1)).reshape(Cout, Kh * Kw * Cin)
    w_t = w_t.astype(dtype)

    # Hold bias folded past the (linear) conv: conv(bias-plane) is x-independent and
    # exact including the conv's zero-padded border windows.  Parameter-only work.
    bias_plane = jnp.broadcast_to(
        hold_bias.astype(jnp.float32).reshape(1, C, 1, 1), (1, C, H, W))
    bias_map = lax.conv_general_dilated(
        bias_plane, conv_weight_oihw.astype(jnp.float32), stride,
        [(padding[0], padding[0]), (padding[1], padding[1])],
        dimension_numbers=('NCHW', 'OIHW', 'NCHW'))                # (1, Cout, Ho, Wo)
    bias_map = bias_map.reshape(Cout, Ho * Wo)

    # ---- VMEM budget: exact padded tiles + margin, generation-aware cap ----------
    vmem_need = (2 * _padded_tile_bytes((4, Hh, Wh, C), dtype)          # input (dbl-buf)
                 + 2 * _padded_tile_bytes((Cout, Kh * Kw * Cin), dtype)
                 + 2 * _padded_tile_bytes((Cout, Ho * Wo), np.float32)  # bias map
                 + 2 * _padded_tile_bytes((1, Cout, Ho * Wo), dtype)    # output (dbl-buf)
                 + _padded_tile_bytes((4, Hh, Wh, C), np.float32))      # f32 hold scratch
    try:
        phys_vmem = int(pltpu.get_tpu_info().vmem_capacity_bytes)
    except Exception:   # device query unavailable (e.g. emulation): conservative default
        phys_vmem = 64 * 1024 * 1024
    vmem_cap = min(int(phys_vmem * 0.85), 100 * 1024 * 1024)
    vmem_limit = min(max(int(vmem_need * 1.25), 16 * 1024 * 1024), vmem_cap)
    vmem_limit = max(vmem_limit, min(vmem_need, vmem_cap))

    cost = pl.CostEstimate(
        flops=2 * N * Ho * Wo * Kh * Kw * Cin * Cout + 3 * N * H * W * C,
        transcendentals=0,
        bytes_accessed=(xpar.size + w_t.size + N * Cout * Ho * Wo) * isz
                       + bias_map.size * 4,
    )

    kernel = _make_fused_kernel(Ho, Wo, C, Cout, dtype, im2col)
    out_flat = pl.pallas_call(
        kernel,
        out_shape=jax.ShapeDtypeStruct((N, Cout, Ho * Wo), dtype),
        grid_spec=pltpu.PrefetchScalarGridSpec(
            num_scalar_prefetch=0,
            grid=(N,),
            in_specs=[
                pl.BlockSpec((4, Hh, Wh, C), lambda n: (n, 0, 0, 0)),
                pl.BlockSpec((Cout, Kh * Kw * Cin), lambda n: (0, 0)),
                pl.BlockSpec((Cout, Ho * Wo), lambda n: (0, 0)),
            ],
            out_specs=pl.BlockSpec((1, Cout, Ho * Wo), lambda n: (n, 0, 0)),
            scratch_shapes=[pltpu.VMEM((4, Hh, Wh, C), jnp.float32)],
        ),
        compiler_params=pltpu.CompilerParams(
            dimension_semantics=("parallel",),
            vmem_limit_bytes=vmem_limit,
        ),
        cost_estimate=cost,
    )(xpar, w_t, bias_map)

    # (N, Cout, Ho*Wo) slab is already NC(HW): only a free metadata reshape remains.
    return out_flat.reshape(N, Cout, Ho, Wo)


# ----------------------------------------------------------------------------
# Pure-JAX reference (correctness check)
# ----------------------------------------------------------------------------
def reference_forward(x_nchw, hold_kernel_2d, hold_bias, conv_weight_oihw, stride, padding):
    N, C, H, W = x_nchw.shape
    HKh, HKw = hold_kernel_2d.shape
    xp = jnp.pad(x_nchw, ((0, 0), (0, 0),
                          (HKh // 2, (HKh - 1) // 2),
                          (HKw // 2, (HKw - 1) // 2)))
    dw = jnp.broadcast_to(jnp.asarray(hold_kernel_2d)[None, None], (C, 1, HKh, HKw))
    y = jax.lax.conv_general_dilated(xp, dw, (1, 1), 'VALID',
                                     feature_group_count=C,
                                     dimension_numbers=('NCHW', 'OIHW', 'NCHW'))
    y = y + hold_bias.reshape(1, C, 1, 1)
    out = jax.lax.conv_general_dilated(
        y, conv_weight_oihw, stride,
        [(padding[0], padding[0]), (padding[1], padding[1])],
        dimension_numbers=('NCHW', 'OIHW', 'NCHW'))
    return out


if __name__ == "__main__":
    key = jax.random.PRNGKey(0)
    k1, k2, k3 = jax.random.split(key, 3)

    # DownSampling2d(in_channels=4, out_channels=8, kernel_size=3, stride=2,
    #                padding=1, order=0, hold_mode='hold_first', bias_mode='bias_first')
    N, Cin, H, W = 2, 4, 16, 16
    Cout, Ksz = 8, 3
    stride, padding, order = (2, 2), (1, 1), 0

    x = jax.random.normal(k1, (N, Cin, H, W), jnp.float32)

    hold_kernel_2d = _generate_hold_kernel_np(stride, order)        # 2x2 ones
    bound = 1.0 / math.sqrt(float(hold_kernel_2d.size))
    hold_bias = jax.random.uniform(k2, (Cin,), jnp.float32, -bound, bound)
    wbound = 1.0 / math.sqrt(Cin * Ksz * Ksz)
    conv_weight = jax.random.uniform(k3, (Cout, Cin, Ksz, Ksz), jnp.float32,
                                     -wbound, wbound)

    fwd = jax.jit(lambda xx, hb, cw: downsampling2d_apply(
        xx, hold_kernel_2d, hb, cw, stride, padding))
    out = jax.block_until_ready(fwd(x, hold_bias, conv_weight))

    ref = reference_forward(x, hold_kernel_2d, hold_bias, conv_weight, stride, padding)
    Ho = (H + 2 * padding[0] - Ksz) // stride[0] + 1
    Wo = (W + 2 * padding[1] - Ksz) // stride[1] + 1
    assert out.shape == (N, Cout, Ho, Wo)
    np.testing.assert_allclose(np.asarray(out), np.asarray(ref), rtol=1e-4, atol=1e-4)
    print("KERNEL_OK")
</pallas_src>

<mosaic_0001>
module attributes {stable_mosaic.version = 11 : i64} {
  func.func @kernel(%arg0: i32, %arg1: memref<4x9x9x4xf32, #tpu.memory_space<vmem>>, %arg2: memref<8x36xf32, #tpu.memory_space<vmem>>, %arg3: memref<8x64xf32, #tpu.memory_space<vmem>>, %arg4: memref<1x8x64xf32, #tpu.memory_space<vmem>>, %arg5: memref<4x9x9x4xf32, #tpu.memory_space<vmem>>) attributes {dimension_semantics = [#tpu.dimension_semantics<parallel>], iteration_bounds = array<i64: 2>, scalar_prefetch = 0 : i64, scratch_operands = 1 : i64, tpu.core_type = #tpu.core_type<tc>, window_params = [{transform_indices = @transform_0, window_bounds = array<i64: 4, 9, 9, 4>}, {pipeline_mode = #tpu.pipeline_mode<synchronous>, transform_indices = @transform_1, window_bounds = array<i64: 8, 36>}, {pipeline_mode = #tpu.pipeline_mode<synchronous>, transform_indices = @transform_2, window_bounds = array<i64: 8, 64>}, {transform_indices = @transform_3, window_bounds = array<i64: 1, 8, 64>}]} {
    %cst = arith.constant 0.000000e+00 : f32
    %0 = vector.broadcast %cst : f32 to vector<1x9x4xf32>
    %c0 = arith.constant 0 : index
    %c0_0 = arith.constant 0 : index
    %c0_1 = arith.constant 0 : index
    %c0_2 = arith.constant 0 : index
    %1 = vector.load %arg5[%c0, %c0_0, %c0_1, %c0_2] : memref<4x9x9x4xf32, #tpu.memory_space<vmem>>, vector<1x1x9x4xf32>
    %2 = vector.shape_cast %1 : vector<1x1x9x4xf32> to vector<1x9x4xf32>
    %3 = vector.shape_cast %0 : vector<1x9x4xf32> to vector<1x1x9x4xf32>
    tpu.vector_store %arg5[%c0, %c0_0, %c0_1, %c0_2], %3 {strides = array<i32>} : memref<4x9x9x4xf32, #tpu.memory_space<vmem>>, vector<1x1x9x4xf32>,
    %cst_3 = arith.constant 0.000000e+00 : f32
    %4 = vector.broadcast %cst_3 : f32 to vector<9x1x4xf32>
    %c0_4 = arith.constant 0 : index
    %c0_5 = arith.constant 0 : index
    %c0_6 = arith.constant 0 : index
    %c0_7 = arith.constant 0 : index
    %5 = vector.load %arg5[%c0_4, %c0_5, %c0_6, %c0_7] : memref<4x9x9x4xf32, #tpu.memory_space<vmem>>, vector<1x9x1x4xf32>
    %6 = vector.shape_cast %5 : vector<1x9x1x4xf32> to vector<9x1x4xf32>
    %7 = vector.shape_cast %4 : vector<9x1x4xf32> to vector<1x9x1x4xf32>
    tpu.vector_store %arg5[%c0_4, %c0_5, %c0_6, %c0_7], %7 {strides = array<i32>} : memref<4x9x9x4xf32, #tpu.memory_space<vmem>>, vector<1x9x1x4xf32>,
    %cst_8 = arith.constant 0.000000e+00 : f32
    %8 = vector.broadcast %cst_8 : f32 to vector<1x9x4xf32>
    %c1 = arith.constant 1 : index
    %c0_9 = arith.constant 0 : index
    %c0_10 = arith.constant 0 : index
    %c0_11 = arith.constant 0 : index
    %9 = vector.load %arg5[%c1, %c0_9, %c0_10, %c0_11] : memref<4x9x9x4xf32, #tpu.memory_space<vmem>>, vector<1x1x9x4xf32>
    %10 = vector.shape_cast %9 : vector<1x1x9x4xf32> to vector<1x9x4xf32>
    %11 = vector.shape_cast %8 : vector<1x9x4xf32> to vector<1x1x9x4xf32>
    tpu.vector_store %arg5[%c1, %c0_9, %c0_10, %c0_11], %11 {strides = array<i32>} : memref<4x9x9x4xf32, #tpu.memory_space<vmem>>, vector<1x1x9x4xf32>,
    %cst_12 = arith.constant 0.000000e+00 : f32
    %12 = vector.broadcast %cst_12 : f32 to vector<9x1x4xf32>
    %c2 = arith.constant 2 : index
    %c0_13 = arith.constant 0 : index
    %c0_14 = arith.constant 0 : index
    %c0_15 = arith.constant 0 : index
    %13 = vector.load %arg5[%c2, %c0_13, %c0_14, %c0_15] : memref<4x9x9x4xf32, #tpu.memory_space<vmem>>, vector<1x9x1x4xf32>
    %14 = vector.shape_cast %13 : vector<1x9x1x4xf32> to vector<9x1x4xf32>
    %15 = vector.shape_cast %12 : vector<9x1x4xf32> to vector<1x9x1x4xf32>
    tpu.vector_store %arg5[%c2, %c0_13, %c0_14, %c0_15], %15 {strides = array<i32>} : memref<4x9x9x4xf32, #tpu.memory_space<vmem>>, vector<1x9x1x4xf32>,
    %c0_16 = arith.constant 0 : index
    %c1_17 = arith.constant 1 : index
    %c1_18 = arith.constant 1 : index
    %c0_19 = arith.constant 0 : index
    %16 = vector.load %arg1[%c0_16, %c1_17, %c1_18, %c0_19] : memref<4x9x9x4xf32, #tpu.memory_space<vmem>>, vector<1x8x8x4xf32>
    %17 = vector.shape_cast %16 : vector<1x8x8x4xf32> to vector<8x8x4xf32>
    %c1_20 = arith.constant 1 : index
    %c1_21 = arith.constant 1 : index
    %c0_22 = arith.constant 0 : index
    %c0_23 = arith.constant 0 : index
    %18 = vector.load %arg1[%c1_20, %c1_21, %c0_22, %c0_23] : memref<4x9x9x4xf32, #tpu.memory_space<vmem>>, vector<1x8x8x4xf32>
    %19 = vector.shape_cast %18 : vector<1x8x8x4xf32> to vector<8x8x4xf32>
    %20 = arith.addf %17, %19 : vector<8x8x4xf32>
    %c2_24 = arith.constant 2 : index
    %c0_25 = arith.constant 0 : index
    %c1_26 = arith.constant 1 : index
    %c0_27 = arith.constant 0 : index
    %21 = vector.load %arg1[%c2_24, %c0_25, %c1_26, %c0_27] : memref<4x9x9x4xf32, #tpu.memory_space<vmem>>, vector<1x8x8x4xf32>
    %22 = vector.shape_cast %21 : vector<1x8x8x4xf32> to vector<8x8x4xf32>
    %23 = arith.addf %20, %22 : vector<8x8x4xf32>
    %c3 = arith.constant 3 : index
    %c0_28 = arith.constant 0 : index
    %c0_29 = arith.constant 0 : index
    %c0_30 = arith.constant 0 : index
    %24 = vector.load %arg1[%c3, %c0_28, %c0_29, %c0_30] : memref<4x9x9x4xf32, #tpu.memory_space<vmem>>, vector<1x8x8x4xf32>
    %25 = vector.shape_cast %24 : vector<1x8x8x4xf32> to vector<8x8x4xf32>
    %26 = arith.addf %23, %25 : vector<8x8x4xf32>
    %c0_31 = arith.constant 0 : index
    %c1_32 = arith.constant 1 : index
    %c1_33 = arith.constant 1 : index
    %c0_34 = arith.constant 0 : index
    %27 = vector.load %arg5[%c0_31, %c1_32, %c1_33, %c0_34] : memref<4x9x9x4xf32, #tpu.memory_space<vmem>>, vector<1x8x8x4xf32>
    %28 = vector.shape_cast %27 : vector<1x8x8x4xf32> to vector<8x8x4xf32>
    %29 = vector.shape_cast %26 : vector<8x8x4xf32> to vector<1x8x8x4xf32>
    tpu.vector_store %arg5[%c0_31, %c1_32, %c1_33, %c0_34], %29 {strides = array<i32>} : memref<4x9x9x4xf32, #tpu.memory_space<vmem>>, vector<1x8x8x4xf32>,
    %c0_35 = arith.constant 0 : index
    %c1_36 = arith.constant 1 : index
    %c0_37 = arith.constant 0 : index
    %c0_38 = arith.constant 0 : index
    %30 = vector.load %arg1[%c0_35, %c1_36, %c0_37, %c0_38] : memref<4x9x9x4xf32, #tpu.memory_space<vmem>>, vector<1x8x8x4xf32>
    %31 = vector.shape_cast %30 : vector<1x8x8x4xf32> to vector<8x8x4xf32>
    %c1_39 = arith.constant 1 : index
    %c1_40 = arith.constant 1 : index
    %c0_41 = arith.constant 0 : index
    %c0_42 = arith.constant 0 : index
    %32 = vector.load %arg1[%c1_39, %c1_40, %c0_41, %c0_42] : memref<4x9x9x4xf32, #tpu.memory_space<vmem>>, vector<1x8x8x4xf32>
    %33 = vector.shape_cast %32 : vector<1x8x8x4xf32> to vector<8x8x4xf32>
    %34 = arith.addf %31, %33 : vector<8x8x4xf32>
    %c2_43 = arith.constant 2 : index
    %c0_44 = arith.constant 0 : index
    %c0_45 = arith.constant 0 : index
    %c0_46 = arith.constant 0 : index
    %35 = vector.load %arg1[%c2_43, %c0_44, %c0_45, %c0_46] : memref<4x9x9x4xf32, #tpu.memory_space<vmem>>, vector<1x8x8x4xf32>
    %36 = vector.shape_cast %35 : vector<1x8x8x4xf32> to vector<8x8x4xf32>
    %37 = arith.addf %34, %36 : vector<8x8x4xf32>
    %c3_47 = arith.constant 3 : index
    %c0_48 = arith.constant 0 : index
    %c0_49 = arith.constant 0 : index
    %c0_50 = arith.constant 0 : index
    %38 = vector.load %arg1[%c3_47, %c0_48, %c0_49, %c0_50] : memref<4x9x9x4xf32, #tpu.memory_space<vmem>>, vector<1x8x8x4xf32>
    %39 = vector.shape_cast %38 : vector<1x8x8x4xf32> to vector<8x8x4xf32>
    %40 = arith.addf %37, %39 : vector<8x8x4xf32>
    %c1_51 = arith.constant 1 : index
    %c1_52 = arith.constant 1 : index
    %c0_53 = arith.constant 0 : index
    %c0_54 = arith.constant 0 : index
    %41 = vector.load %arg5[%c1_51, %c1_52, %c0_53, %c0_54] : memref<4x9x9x4xf32, #tpu.memory_space<vmem>>, vector<1x8x8x4xf32>
    %42 = vector.shape_cast %41 : vector<1x8x8x4xf32> to vector<8x8x4xf32>
    %43 = vector.shape_cast %40 : vector<8x8x4xf32> to vector<1x8x8x4xf32>
    tpu.vector_store %arg5[%c1_51, %c1_52, %c0_53, %c0_54], %43 {strides = array<i32>} : memref<4x9x9x4xf32, #tpu.memory_space<vmem>>, vector<1x8x8x4xf32>,
    %c0_55 = arith.constant 0 : index
    %c0_56 = arith.constant 0 : index
    %c1_57 = arith.constant 1 : index
    %c0_58 = arith.constant 0 : index
    %44 = vector.load %arg1[%c0_55, %c0_56, %c1_57, %c0_58] : memref<4x9x9x4xf32, #tpu.memory_space<vmem>>, vector<1x8x8x4xf32>
    %45 = vector.shape_cast %44 : vector<1x8x8x4xf32> to vector<8x8x4xf32>
    %c1_59 = arith.constant 1 : index
    %c0_60 = arith.constant 0 : index
    %c0_61 = arith.constant 0 : index
    %c0_62 = arith.constant 0 : index
    %46 = vector.load %arg1[%c1_59, %c0_60, %c0_61, %c0_62] : memref<4x9x9x4xf32, #tpu.memory_space<vmem>>, vector<1x8x8x4xf32>
    %47 = vector.shape_cast %46 : vector<1x8x8x4xf32> to vector<8x8x4xf32>
    %48 = arith.addf %45, %47 : vector<8x8x4xf32>
    %c2_63 = arith.constant 2 : index
    %c0_64 = arith.constant 0 : index
    %c1_65 = arith.constant 1 : index
    %c0_66 = arith.constant 0 : index
    %49 = vector.load %arg1[%c2_63, %c0_64, %c1_65, %c0_66] : memref<4x9x9x4xf32, #tpu.memory_space<vmem>>, vector<1x8x8x4xf32>
    %50 = vector.shape_cast %49 : vector<1x8x8x4xf32> to vector<8x8x4xf32>
    %51 = arith.addf %48, %50 : vector<8x8x4xf32>
    %c3_67 = arith.constant 3 : index
    %c0_68 = arith.constant 0 : index
    %c0_69 = arith.constant 0 : index
    %c0_70 = arith.constant 0 : index
    %52 = vector.load %arg1[%c3_67, %c0_68, %c0_69, %c0_70] : memref<4x9x9x4xf32, #tpu.memory_space<vmem>>, vector<1x8x8x4xf32>
    %53 = vector.shape_cast %52 : vector<1x8x8x4xf32> to vector<8x8x4xf32>
    %54 = arith.addf %51, %53 : vector<8x8x4xf32>
    %c2_71 = arith.constant 2 : index
    %c0_72 = arith.constant 0 : index
    %c1_73 = arith.constant 1 : index
    %c0_74 = arith.constant 0 : index
    %55 = vector.load %arg5[%c2_71, %c0_72, %c1_73, %c0_74] : memref<4x9x9x4xf32, #tpu.memory_space<vmem>>, vector<1x8x8x4xf32>
    %56 = vector.shape_cast %55 : vector<1x8x8x4xf32> to vector<8x8x4xf32>
    %57 = vector.shape_cast %54 : vector<8x8x4xf32> to vector<1x8x8x4xf32>
    tpu.vector_store %arg5[%c2_71, %c0_72, %c1_73, %c0_74], %57 {strides = array<i32>} : memref<4x9x9x4xf32, #tpu.memory_space<vmem>>, vector<1x8x8x4xf32>,
    %c0_75 = arith.constant 0 : index
    %c0_76 = arith.constant 0 : index
    %c0_77 = arith.constant 0 : index
    %c0_78 = arith.constant 0 : index
    %58 = vector.load %arg1[%c0_75, %c0_76, %c0_77, %c0_78] : memref<4x9x9x4xf32, #tpu.memory_space<vmem>>, vector<1x8x8x4xf32>
    %59 = vector.shape_cast %58 : vector<1x8x8x4xf32> to vector<8x8x4xf32>
    %c1_79 = arith.constant 1 : index
    %c0_80 = arith.constant 0 : index
    %c0_81 = arith.constant 0 : index
    %c0_82 = arith.constant 0 : index
    %60 = vector.load %arg1[%c1_79, %c0_80, %c0_81, %c0_82] : memref<4x9x9x4xf32, #tpu.memory_space<vmem>>, vector<1x8x8x4xf32>
    %61 = vector.shape_cast %60 : vector<1x8x8x4xf32> to vector<8x8x4xf32>
    %62 = arith.addf %59, %61 : vector<8x8x4xf32>
    %c2_83 = arith.constant 2 : index
    %c0_84 = arith.constant 0 : index
    %c0_85 = arith.constant 0 : index
    %c0_86 = arith.constant 0 : index
    %63 = vector.load %arg1[%c2_83, %c0_84, %c0_85, %c0_86] : memref<4x9x9x4xf32, #tpu.memory_space<vmem>>, vector<1x8x8x4xf32>
    %64 = vector.shape_cast %63 : vector<1x8x8x4xf32> to vector<8x8x4xf32>
    %65 = arith.addf %62, %64 : vector<8x8x4xf32>
    %c3_87 = arith.constant 3 : index
    %c0_88 = arith.constant 0 : index
    %c0_89 = arith.constant 0 : index
    %c0_90 = arith.constant 0 : index
    %66 = vector.load %arg1[%c3_87, %c0_88, %c0_89, %c0_90] : memref<4x9x9x4xf32, #tpu.memory_space<vmem>>, vector<1x8x8x4xf32>
    %67 = vector.shape_cast %66 : vector<1x8x8x4xf32> to vector<8x8x4xf32>
    %68 = arith.addf %65, %67 : vector<8x8x4xf32>
    %c3_91 = arith.constant 3 : index
    %c0_92 = arith.constant 0 : index
    %c0_93 = arith.constant 0 : index
    %c0_94 = arith.constant 0 : index
    %69 = vector.load %arg5[%c3_91, %c0_92, %c0_93, %c0_94] : memref<4x9x9x4xf32, #tpu.memory_space<vmem>>, vector<1x8x8x4xf32>
    %70 = vector.shape_cast %69 : vector<1x8x8x4xf32> to vector<8x8x4xf32>
    %71 = vector.shape_cast %68 : vector<8x8x4xf32> to vector<1x8x8x4xf32>
    tpu.vector_store %arg5[%c3_91, %c0_92, %c0_93, %c0_94], %71 {strides = array<i32>} : memref<4x9x9x4xf32, #tpu.memory_space<vmem>>, vector<1x8x8x4xf32>,
    %c0_95 = arith.constant 0 : index
    %c0_96 = arith.constant 0 : index
    %c0_97 = arith.constant 0 : index
    %c0_98 = arith.constant 0 : index
    %72 = vector.load %arg5[%c0_95, %c0_96, %c0_97, %c0_98] : memref<4x9x9x4xf32, #tpu.memory_space<vmem>>, vector<1x8x8x4xf32>
    %73 = vector.shape_cast %72 : vector<1x8x8x4xf32> to vector<8x8x4xf32>
    %74 = vector.shape_cast %73 : vector<8x8x4xf32> to vector<64x4xf32>
    %c1_99 = arith.constant 1 : index
    %c0_100 = arith.constant 0 : index
    %c0_101 = arith.constant 0 : index
    %c0_102 = arith.constant 0 : index
    %75 = vector.load %arg5[%c1_99, %c0_100, %c0_101, %c0_102] : memref<4x9x9x4xf32, #tpu.memory_space<vmem>>, vector<1x8x8x4xf32>
    %76 = vector.shape_cast %75 : vector<1x8x8x4xf32> to vector<8x8x4xf32>
    %77 = vector.shape_cast %76 : vector<8x8x4xf32> to vector<64x4xf32>
    %c0_103 = arith.constant 0 : index
    %c0_104 = arith.constant 0 : index
    %c1_105 = arith.constant 1 : index
    %c0_106 = arith.constant 0 : index
    %78 = vector.load %arg5[%c0_103, %c0_104, %c1_105, %c0_106] : memref<4x9x9x4xf32, #tpu.memory_space<vmem>>, vector<1x8x8x4xf32>
    %79 = vector.shape_cast %78 : vector<1x8x8x4xf32> to vector<8x8x4xf32>
    %80 = vector.shape_cast %79 : vector<8x8x4xf32> to vector<64x4xf32>
    %c2_107 = arith.constant 2 : index
    %c0_108 = arith.constant 0 : index
    %c0_109 = arith.constant 0 : index
    %c0_110 = arith.constant 0 : index
    %81 = vector.load %arg5[%c2_107, %c0_108, %c0_109, %c0_110] : memref<4x9x9x4xf32, #tpu.memory_space<vmem>>, vector<1x8x8x4xf32>
    %82 = vector.shape_cast %81 : vector<1x8x8x4xf32> to vector<8x8x4xf32>
    %83 = vector.shape_cast %82 : vector<8x8x4xf32> to vector<64x4xf32>
    %c3_111 = arith.constant 3 : index
    %c0_112 = arith.constant 0 : index
    %c0_113 = arith.constant 0 : index
    %c0_114 = arith.constant 0 : index
    %84 = vector.load %arg5[%c3_111, %c0_112, %c0_113, %c0_114] : memref<4x9x9x4xf32, #tpu.memory_space<vmem>>, vector<1x8x8x4xf32>
    %85 = vector.shape_cast %84 : vector<1x8x8x4xf32> to vector<8x8x4xf32>
    %86 = vector.shape_cast %85 : vector<8x8x4xf32> to vector<64x4xf32>
    %c2_115 = arith.constant 2 : index
    %c0_116 = arith.constant 0 : index
    %c1_117 = arith.constant 1 : index
    %c0_118 = arith.constant 0 : index
    %87 = vector.load %arg5[%c2_115, %c0_116, %c1_117, %c0_118] : memref<4x9x9x4xf32, #tpu.memory_space<vmem>>, vector<1x8x8x4xf32>
    %88 = vector.shape_cast %87 : vector<1x8x8x4xf32> to vector<8x8x4xf32>
    %89 = vector.shape_cast %88 : vector<8x8x4xf32> to vector<64x4xf32>
    %c0_119 = arith.constant 0 : index
    %c1_120 = arith.constant 1 : index
    %c0_121 = arith.constant 0 : index
    %c0_122 = arith.constant 0 : index
    %90 = vector.load %arg5[%c0_119, %c1_120, %c0_121, %c0_122] : memref<4x9x9x4xf32, #tpu.memory_space<vmem>>, vector<1x8x8x4xf32>
    %91 = vector.shape_cast %90 : vector<1x8x8x4xf32> to vector<8x8x4xf32>
    %92 = vector.shape_cast %91 : vector<8x8x4xf32> to vector<64x4xf32>
    %c1_123 = arith.constant 1 : index
    %c1_124 = arith.constant 1 : index
    %c0_125 = arith.constant 0 : index
    %c0_126 = arith.constant 0 : index
    %93 = vector.load %arg5[%c1_123, %c1_124, %c0_125, %c0_126] : memref<4x9x9x4xf32, #tpu.memory_space<vmem>>, vector<1x8x8x4xf32>
    %94 = vector.shape_cast %93 : vector<1x8x8x4xf32> to vector<8x8x4xf32>
    %95 = vector.shape_cast %94 : vector<8x8x4xf32> to vector<64x4xf32>
    %c0_127 = arith.constant 0 : index
    %c1_128 = arith.constant 1 : index
    %c1_129 = arith.constant 1 : index
    %c0_130 = arith.constant 0 : index
    %96 = vector.load %arg5[%c0_127, %c1_128, %c1_129, %c0_130] : memref<4x9x9x4xf32, #tpu.memory_space<vmem>>, vector<1x8x8x4xf32>
    %97 = vector.shape_cast %96 : vector<1x8x8x4xf32> to vector<8x8x4xf32>
    %98 = vector.shape_cast %97 : vector<8x8x4xf32> to vector<64x4xf32>
    %c0_131 = arith.constant 0 : index
    %c0_132 = arith.constant 0 : index
    %99 = vector.load %arg2[%c0_131, %c0_132] : memref<8x36xf32, #tpu.memory_space<vmem>>, vector<8x36xf32>
    %c0_133 = arith.constant 0 : index
    %c0_134 = arith.constant 0 : index
    %100 = vector.load %arg3[%c0_133, %c0_134] : memref<8x64xf32, #tpu.memory_space<vmem>>, vector<8x64xf32>
    %101 = vector.extract_strided_slice %99 {offsets = [0, 0], sizes = [8, 4], strides = [1, 1]} : vector<8x36xf32> to vector<8x4xf32>
    %cst_135 = arith.constant dense<0.000000e+00> : vector<8x64xf32>
    %102 = tpu.matmul %101, %74, %cst_135 {dimension_numbers = #tpu.dot_dimension_numbers<[1], [1], [0], [0], [0, 0, 1, 0], [], []>} : vector<8x4xf32>, vector<64x4xf32>, vector<8x64xf32> -> vector<8x64xf32>
    %103 = arith.addf %100, %102 : vector<8x64xf32>
    %104 = vector.extract_strided_slice %99 {offsets = [0, 4], sizes = [8, 4], strides = [1, 1]} : vector<8x36xf32> to vector<8x4xf32>
    %cst_136 = arith.constant dense<0.000000e+00> : vector<8x64xf32>
    %105 = tpu.matmul %104, %77, %cst_136 {dimension_numbers = #tpu.dot_dimension_numbers<[1], [1], [0], [0], [0, 0, 1, 0], [], []>} : vector<8x4xf32>, vector<64x4xf32>, vector<8x64xf32> -> vector<8x64xf32>
    %106 = arith.addf %103, %105 : vector<8x64xf32>
    %107 = vector.extract_strided_slice %99 {offsets = [0, 8], sizes = [8, 4], strides = [1, 1]} : vector<8x36xf32> to vector<8x4xf32>
    %cst_137 = arith.constant dense<0.000000e+00> : vector<8x64xf32>
    %108 = tpu.matmul %107, %80, %cst_137 {dimension_numbers = #tpu.dot_dimension_numbers<[1], [1], [0], [0], [0, 0, 1, 0], [], []>} : vector<8x4xf32>, vector<64x4xf32>, vector<8x64xf32> -> vector<8x64xf32>
    %109 = arith.addf %106, %108 : vector<8x64xf32>
    %110 = vector.extract_strided_slice %99 {offsets = [0, 12], sizes = [8, 4], strides = [1, 1]} : vector<8x36xf32> to vector<8x4xf32>
    %cst_138 = arith.constant dense<0.000000e+00> : vector<8x64xf32>
    %111 = tpu.matmul %110, %83, %cst_138 {dimension_numbers = #tpu.dot_dimension_numbers<[1], [1], [0], [0], [0, 0, 1, 0], [], []>} : vector<8x4xf32>, vector<64x4xf32>, vector<8x64xf32> -> vector<8x64xf32>
    %112 = arith.addf %109, %111 : vector<8x64xf32>
    %113 = vector.extract_strided_slice %99 {offsets = [0, 16], sizes = [8, 4], strides = [1, 1]} : vector<8x36xf32> to vector<8x4xf32>
    %cst_139 = arith.constant dense<0.000000e+00> : vector<8x64xf32>
    %114 = tpu.matmul %113, %86, %cst_139 {dimension_numbers = #tpu.dot_dimension_numbers<[1], [1], [0], [0], [0, 0, 1, 0], [], []>} : vector<8x4xf32>, vector<64x4xf32>, vector<8x64xf32> -> vector<8x64xf32>
    %115 = arith.addf %112, %114 : vector<8x64xf32>
    %116 = vector.extract_strided_slice %99 {offsets = [0, 20], sizes = [8, 4], strides = [1, 1]} : vector<8x36xf32> to vector<8x4xf32>
    %cst_140 = arith.constant dense<0.000000e+00> : vector<8x64xf32>
    %117 = tpu.matmul %116, %89, %cst_140 {dimension_numbers = #tpu.dot_dimension_numbers<[1], [1], [0], [0], [0, 0, 1, 0], [], []>} : vector<8x4xf32>, vector<64x4xf32>, vector<8x64xf32> -> vector<8x64xf32>
    %118 = arith.addf %115, %117 : vector<8x64xf32>
    %119 = vector.extract_strided_slice %99 {offsets = [0, 24], sizes = [8, 4], strides = [1, 1]} : vector<8x36xf32> to vector<8x4xf32>
    %cst_141 = arith.constant dense<0.000000e+00> : vector<8x64xf32>
    %120 = tpu.matmul %119, %92, %cst_141 {dimension_numbers = #tpu.dot_dimension_numbers<[1], [1], [0], [0], [0, 0, 1, 0], [], []>} : vector<8x4xf32>, vector<64x4xf32>, vector<8x64xf32> -> vector<8x64xf32>
    %121 = arith.addf %118, %120 : vector<8x64xf32>
    %122 = vector.extract_strided_slice %99 {offsets = [0, 28], sizes = [8, 4], strides = [1, 1]} : vector<8x36xf32> to vector<8x4xf32>
    %cst_142 = arith.constant dense<0.000000e+00> : vector<8x64xf32>
    %123 = tpu.matmul %122, %95, %cst_142 {dimension_numbers = #tpu.dot_dimension_numbers<[1], [1], [0], [0], [0, 0, 1, 0], [], []>} : vector<8x4xf32>, vector<64x4xf32>, vector<8x64xf32> -> vector<8x64xf32>
    %124 = arith.addf %121, %123 : vector<8x64xf32>
    %125 = vector.extract_strided_slice %99 {offsets = [0, 32], sizes = [8, 4], strides = [1, 1]} : vector<8x36xf32> to vector<8x4xf32>
    %cst_143 = arith.constant dense<0.000000e+00> : vector<8x64xf32>
    %126 = tpu.matmul %125, %98, %cst_143 {dimension_numbers = #tpu.dot_dimension_numbers<[1], [1], [0], [0], [0, 0, 1, 0], [], []>} : vector<8x4xf32>, vector<64x4xf32>, vector<8x64xf32> -> vector<8x64xf32>
    %127 = arith.addf %124, %126 : vector<8x64xf32>
    %c0_144 = arith.constant 0 : index
    %c0_145 = arith.constant 0 : index
    %c0_146 = arith.constant 0 : index
    %128 = vector.load %arg4[%c0_144, %c0_145, %c0_146] : memref<1x8x64xf32, #tpu.memory_space<vmem>>, vector<1x8x64xf32>
    %129 = vector.shape_cast %128 : vector<1x8x64xf32> to vector<8x64xf32>
    %130 = vector.shape_cast %127 : vector<8x64xf32> to vector<1x8x64xf32>
    tpu.vector_store %arg4[%c0_144, %c0_145, %c0_146], %130 {strides = array<i32>} : memref<1x8x64xf32, #tpu.memory_space<vmem>>, vector<1x8x64xf32>,
    return
  }
  func.func @transform_0(%arg0: i32) -> (i32, i32, i32, i32) {
    %c0_i32 = arith.constant 0 : i32
    %c0_i32_0 = arith.constant 0 : i32
    %c0_i32_1 = arith.constant 0 : i32
    %c0_i32_2 = arith.constant 0 : i32
    return %arg0, %c0_i32, %c0_i32_0, %c0_i32_1 : i32, i32, i32, i32
  }
  func.func @transform_1(%arg0: i32) -> (i32, i32) {
    %c0_i32 = arith.constant 0 : i32
    %c0_i32_0 = arith.constant 0 : i32
    %c0_i32_1 = arith.constant 0 : i32
    return %c0_i32, %c0_i32_0 : i32, i32
  }
  func.func @transform_2(%arg0: i32) -> (i32, i32) {
    %c0_i32 = arith.constant 0 : i32
    %c0_i32_0 = arith.constant 0 : i32
    %c0_i32_1 = arith.constant 0 : i32
    return %c0_i32, %c0_i32_0 : i32, i32
  }
  func.func @transform_3(%arg0: i32) -> (i32, i32, i32) {
    %c0_i32 = arith.constant 0 : i32
    %c0_i32_0 = arith.constant 0 : i32
    %c0_i32_1 = arith.constant 0 : i32
    return %arg0, %c0_i32, %c0_i32_0 : i32, i32, i32
  }
}

</mosaic_0001>

<llo_original>
// kernel: _lambda_.1
$region0: #{_lambda_.1}
  #allocation0 [shape = 'u32[]', space=smem, size = 0x4, offset = 0x4, fixed_abs, tag = 'smem constant byte address 0x4 - core index']
  #allocation1 [shape = 'u32[72,128]{1,0:T(1,128)}', space=vmem, size = 0x9000, scoped, tag = 'internal scratch']
  #allocation2 [shape = 'f32[4,9,9,4]{3,2,1,0:T(8,128)}', space=vmem, size = 0x48000, scoped, tag = 'scratch operand']
  %s0 = inlined_call_operand.vmem [shape: f32[8,9,9,4], index: 0, kind: input, shape index: {}]
  %s1 = inlined_call_operand.vmem [shape: f32[8,36], index: 1, kind: input, shape index: {}]
  %s2 = inlined_call_operand.vmem [shape: f32[8,64], index: 2, kind: input, shape index: {}]
  %s3 = inlined_call_operand.vmem [shape: f32[2,8,64], index: 3, kind: output, shape index: {}]
  %s4 = sld [smem:[#allocation0]]
  $region45: #{_lambda_.1} parent=0
    _
  %s6 = ssub.s32 1, %s4
  %s7 = scalar_select 0, %s6, %s4
  loop: start=0, step=1, limit=4
  $region2: #{_lambda_.1} parent=0 // loop_pre_header
    _
  $region3: #{_lambda_.1} parent=0 // loop_header
    %s9 = sphi 0, %s13
    %p10 = scmp.ge.s32.totalorder %s9, 4
    %s19 = sphi 0, %s21
    %s22 = sphi 0, %s19
    %s23 = sphi 0, %s22
    %s39 = sphi 0, %s23
    %s43 = sphi 0, %s43
    %s45 = sphi 0, %s43
    %s46 = sphi 0, %s45
    %s60 = sphi 0, %s46
    %s64 = sphi 0, %s64
    %s66 = sphi 0, %s64
    %s67 = sphi 0, %s66
    %s81 = sphi 0, %s67
    %s87 = sphi 0, %s89
    %s90 = sphi 0, %s87
    %s91 = sphi 0, %s90
    %s107 = sphi 0, %s91
  $region4: #{_lambda_.1} parent=0 // loop_header_branch
    %12 = sbr.rel (%p10) target = $region8
  $region5: #{_lambda_.1} parent=0 // loop_body
    %s14 = ssub.s32 %s9, 1
    %s15 = ssub.s32 %s9, 2
    %s16 = sadd.s32 %s9, 1
    %s17 = ssub.s32 %s9, %s16
    %p18 = scmp.eq.s32.totalorder %s17, 0
    %s20 = sadd.s32 %s19, 1
    %s21 = scalar_select %p18, %s19, %s20
    %p24 = pneg %p18
    %p25 = scmp.eq.s32.totalorder %s9, 1
    %p26 = por %p24, %p25
    %p27 = scmp.ne.s32.totalorder %s19, %s22
    %p28 = scmp.eq.s32.totalorder %s9, 0
    %p29 = por %p27, %p28
    %p30 = scmp.ne.s32.totalorder %s19, %s22
    %p31 = scmp.eq.s32.totalorder %s14, 1
    %p32 = por %p30, %p31
    %p33 = scmp.ne.s32.totalorder %s22, %s23
    %p34 = scmp.eq.s32.totalorder %s14, 0
    %p35 = por %p33, %p34
    %p36 = scmp.ne.s32.totalorder %s22, %s23
    %p37 = scmp.eq.s32.totalorder %s15, 1
    %p38 = por %p36, %p37
    %p40 = scmp.ne.s32.totalorder %s23, %s39
    %p41 = scmp.eq.s32.totalorder %s15, 0
    %p42 = por %p40, %p41
    %s44 = sadd.s32 %s43, 1
    %p47 = scmp.eq.s32.totalorder %s9, 1
    %p48 = scmp.ne.s32.totalorder %s43, %s45
    %p49 = scmp.eq.s32.totalorder %s9, 0
    %p50 = por %p48, %p49
    %p51 = scmp.ne.s32.totalorder %s43, %s45
    %p52 = scmp.eq.s32.totalorder %s14, 1
    %p53 = por %p51, %p52
    %p54 = scmp.ne.s32.totalorder %s45, %s46
    %p55 = scmp.eq.s32.totalorder %s14, 0
    %p56 = por %p54, %p55
    %p57 = scmp.ne.s32.totalorder %s45, %s46
    %p58 = scmp.eq.s32.totalorder %s15, 1
    %p59 = por %p57, %p58
    %p61 = scmp.ne.s32.totalorder %s46, %s60
    %p62 = scmp.eq.s32.totalorder %s15, 0
    %p63 = por %p61, %p62
    %s65 = sadd.s32 %s64, 1
    %p68 = scmp.eq.s32.totalorder %s9, 1
    %p69 = scmp.ne.s32.totalorder %s64, %s66
    %p70 = scmp.eq.s32.totalorder %s9, 0
    %p71 = por %p69, %p70
    %p72 = scmp.ne.s32.totalorder %s64, %s66
    %p73 = scmp.eq.s32.totalorder %s14, 1
    %p74 = por %p72, %p73
    %p75 = scmp.ne.s32.totalorder %s66, %s67
    %p76 = scmp.eq.s32.totalorder %s14, 0
    %p77 = por %p75, %p76
    %p78 = scmp.ne.s32.totalorder %s66, %s67
    %p79 = scmp.eq.s32.totalorder %s15, 1
    %p80 = por %p78, %p79
    %p82 = scmp.ne.s32.totalorder %s67, %s81
    %p83 = scmp.eq.s32.totalorder %s15, 0
    %p84 = por %p82, %p83
    %s85 = ssub.s32 %s9, %s16
    %p86 = scmp.eq.s32.totalorder %s85, 0
    %s88 = sadd.s32 %s87, 1
    %s89 = scalar_select %p86, %s87, %s88
    %p92 = pneg %p86
    %p93 = scmp.eq.s32.totalorder %s9, 1
    %p94 = por %p92, %p93
    %p95 = scmp.ne.s32.totalorder %s87, %s90
    %p96 = scmp.eq.s32.totalorder %s9, 0
    %p97 = por %p95, %p96
    %p98 = scmp.ne.s32.totalorder %s87, %s90
    %p99 = scmp.eq.s32.totalorder %s14, 1
    %p100 = por %p98, %p99
    %p101 = scmp.ne.s32.totalorder %s90, %s91
    %p102 = scmp.eq.s32.totalorder %s14, 0
    %p103 = por %p101, %p102
    %p104 = scmp.ne.s32.totalorder %s90, %s91
    %p105 = scmp.eq.s32.totalorder %s15, 1
    %p106 = por %p104, %p105
    %p108 = scmp.ne.s32.totalorder %s91, %s107
    %p109 = scmp.eq.s32.totalorder %s15, 0
    %p110 = por %p108, %p109
    %p111 = scmp.le.s32.totalorder 1, %s9
    %p112 = scmp.lt.s32.totalorder %s9, 3
    %p113 = pnand %p111, %p112
    %p114 = pneg %p113
    // Predicated region
    $region9: #{_lambda_.1} parent=5 // pred_check
      _
    $region10: #{_lambda_.1} parent=5 // pred_check_branch
      %116 = sbr.rel (%p113) target = $region12
    $region11: #{_lambda_.1} parent=5 // pred_region
      %s117 = ssub.s32 %s9, 1
      // Predicated region
      $region13: #{_lambda_.1} parent=11 // pred_check
        %p118 = pneg %p56
      $region14: #{_lambda_.1} parent=11 // pred_check_branch
        %120 = sbr.rel (%p118) target = $region16
      $region15: #{_lambda_.1} parent=11 // pred_region
        _
      $region16: #{_lambda_.1} parent=11 // pred_fallthru
        _
      // Predicated region
      $region17: #{_lambda_.1} parent=11 // pred_check
        %p121 = pneg %p77
      $region18: #{_lambda_.1} parent=11 // pred_check_branch
        %123 = sbr.rel (%p121) target = $region20
      $region19: #{_lambda_.1} parent=11 // pred_region
        _
      $region20: #{_lambda_.1} parent=11 // pred_fallthru
        _
    $region12: #{_lambda_.1} parent=5 // pred_fallthru
      _
    %p124 = scmp.lt.s32.totalorder %s9, 2
    // Predicated region
    $region21: #{_lambda_.1} parent=5 // pred_check
      %p125 = pneg %p124
    $region22: #{_lambda_.1} parent=5 // pred_check_branch
      %127 = sbr.rel (%p125) target = $region24
    $region23: #{_lambda_.1} parent=5 // pred_region
      // Predicated region
      $region25: #{_lambda_.1} parent=23 // pred_check
        %p128 = pneg %p29
      $region26: #{_lambda_.1} parent=23 // pred_check_branch
        %130 = sbr.rel (%p128) target = $region28
      $region27: #{_lambda_.1} parent=23 // pred_region
        %s131 = smul.u32 4, %s9
        %p132 = scmp.lt.s32.totalorder %s131, 7
        %s133 = scalar_select %p132, %s131, 7
        %s134 = smul.addr %s133, 18
        %s135 = smul.addr %s134, 8
        %s136 = scalar_lea.vmem %s0, %s135
        %s137 = smul.u32 4, %s9
      $region28: #{_lambda_.1} parent=23 // pred_fallthru
        _
    $region24: #{_lambda_.1} parent=5 // pred_fallthru
      _
    %p138 = scmp.le.s32.totalorder 1, %s9
    %p139 = scmp.lt.s32.totalorder %s9, 3
    %p140 = pnand %p138, %p139
    %p141 = pneg %p140
    // Predicated region
    $region29: #{_lambda_.1} parent=5 // pred_check
      _
    $region30: #{_lambda_.1} parent=5 // pred_check_branch
      %143 = sbr.rel (%p140) target = $region32
    $region31: #{_lambda_.1} parent=5 // pred_region
      %s144 = ssub.s32 %s9, 1
      %s145 = smul.u32 4, %s14
      %p146 = scmp.lt.s32.totalorder %s145, 7
      %s147 = scalar_select %p146, %s145, 7
      %s148 = smul.addr %s147, 18
      %s149 = smul.addr %s148, 8
      %s150 = scalar_lea.vmem %s0, %s149
      %p151 = pneg %p35
      %p152 = pneg %p32
      %p153 = pneg %p56
      %p154 = pneg %p53
      %p155 = pneg %p77
      %p156 = pneg %p74
      %p157 = pneg %p103
      %p158 = pneg %p100
      %p159 = scmp.lt.s32.totalorder %s14, 1
      %s160 = scalar_select %p159, %s14, 1
      %s161 = smul.addr %s160, 8
      %s162 = scalar_lea.vmem %s3, %s161
      %s163 = smul.u32 4, %s14
      %p164 = scmp.lt.s32.totalorder %s163, 7
      %s165 = scalar_select %p164, %s163, 7
      %s166 = smul.addr %s165, 18
      %s167 = smul.addr %s166, 8
      %s168 = scalar_lea.vmem %s0, %s167
      %s169 = smul.u32 4, %s14
      %p170 = scmp.lt.s32.totalorder %s14, 1
      %s171 = scalar_select %p170, %s14, 1
      %s172 = smul.addr %s171, 8
      %s173 = scalar_lea.vmem %s3, %s172
      %vm174 = vcmask 31744
      %175 = vst.msk [vmem:[#allocation2] sm:$0xff] %vm174, 0.0
      %vm176 = vcmask 24576
      %177 = vst.msk [vmem:[#allocation2 + $0x8] sm:$0x1] %vm176, 0.0
      %178 = vst.msk [vmem:[#allocation2] sm:$0x1] %vm176, 0.0
      %179 = vst.msk [vmem:[#allocation2 + $0x10] sm:$0x1] %vm176, 0.0
      %180 = vst.msk [vmem:[#allocation2 + $0x20] sm:$0x1] %vm176, 0.0
      %181 = vst.msk [vmem:[#allocation2 + $0x30] sm:$0x1] %vm176, 0.0
      %182 = vst.msk [vmem:[#allocation2 + $0x40] sm:$0x1] %vm176, 0.0
      %183 = vst.msk [vmem:[#allocation2 + $0x50] sm:$0x1] %vm176, 0.0
      %184 = vst.msk [vmem:[#allocation2 + $0x60] sm:$0x1] %vm176, 0.0
      %185 = vst.msk [vmem:[#allocation2 + $0x70] sm:$0x1] %vm176, 0.0
      %186 = vst.msk [vmem:[#allocation2 + $0x80] sm:$0x1] %vm176, 0.0
      %s187 = scalar_lea.vmem [#allocation2], 144
      %188 = vst.msk [vmem:[%s187] sm:$0xff] %vm174, 0.0
      %189 = vst.msk [vmem:[%s187 + $0x8] sm:$0x1] %vm176, 0.0
      %s190 = scalar_lea.vmem [#allocation2], 288
      %191 = vst.msk [vmem:[%s190] sm:$0x1] %vm176, 0.0
      %192 = vst.msk [vmem:[%s190 + $0x10] sm:$0x1] %vm176, 0.0
      %193 = vst.msk [vmem:[%s190 + $0x20] sm:$0x1] %vm176, 0.0
      %194 = vst.msk [vmem:[%s190 + $0x30] sm:$0x1] %vm176, 0.0
      %195 = vst.msk [vmem:[%s190 + $0x40] sm:$0x1] %vm176, 0.0
      %196 = vst.msk [vmem:[%s190 + $0x50] sm:$0x1] %vm176, 0.0
      %197 = vst.msk [vmem:[%s190 + $0x60] sm:$0x1] %vm176, 0.0
      %198 = vst.msk [vmem:[%s190 + $0x70] sm:$0x1] %vm176, 0.0
      %199 = vst.msk [vmem:[%s190 + $0x80] sm:$0x1] %vm176, 0.0
      %s200 = scalar_lea.vmem %s168, 16
      %v201 = vld [vmem:[%s200 + $0x1] sm:$0xff]
      %v202 = vld [vmem:[%s200 + $0x11] sm:$0xff]
      %v203 = vld [vmem:[%s200 + $0x21] sm:$0xff]
      %v204 = vld [vmem:[%s200 + $0x31] sm:$0xff]
      %v205 = vld [vmem:[%s200 + $0x41] sm:$0xff]
      %v206 = vld [vmem:[%s200 + $0x51] sm:$0xff]
      %v207 = vld [vmem:[%s200 + $0x61] sm:$0xff]
      %v208 = vld [vmem:[%s200 + $0x71] sm:$0xff]
      %s209 = scalar_lea.vmem %s168, 160
      %v210 = vld [vmem:[%s209] sm:$0xff]
      %v211 = vld [vmem:[%s209 + $0x10] sm:$0xff]
      %v212 = vld [vmem:[%s209 + $0x20] sm:$0xff]
      %v213 = vld [vmem:[%s209 + $0x30] sm:$0xff]
      %v214 = vld [vmem:[%s209 + $0x40] sm:$0xff]
      %v215 = vld [vmem:[%s209 + $0x50] sm:$0xff]
      %v216 = vld [vmem:[%s209 + $0x60] sm:$0xff]
      %v217 = vld [vmem:[%s209 + $0x70] sm:$0xff]
      %v218 = vadd.f32 %v201, %v210
      %v219 = vadd.f32 %v202, %v211
      %v220 = vadd.f32 %v203, %v212
      %v221 = vadd.f32 %v204, %v213
      %v222 = vadd.f32 %v205, %v214
      %v223 = vadd.f32 %v206, %v215
      %v224 = vadd.f32 %v207, %v216
      %v225 = vadd.f32 %v208, %v217
      %s226 = scalar_lea.vmem %s168, 288
      %v227 = vld [vmem:[%s226 + $0x1] sm:$0xff]
      %v228 = vld [vmem:[%s226 + $0x11] sm:$0xff]
      %v229 = vld [vmem:[%s226 + $0x21] sm:$0xff]
      %v230 = vld [vmem:[%s226 + $0x31] sm:$0xff]
      %v231 = vld [vmem:[%s226 + $0x41] sm:$0xff]
      %v232 = vld [vmem:[%s226 + $0x51] sm:$0xff]
      %v233 = vld [vmem:[%s226 + $0x61] sm:$0xff]
      %v234 = vld [vmem:[%s226 + $0x71] sm:$0xff]
      %v235 = vadd.f32 %v218, %v227
      %v236 = vadd.f32 %v219, %v228
      %v237 = vadd.f32 %v220, %v229
      %v238 = vadd.f32 %v221, %v230
      %v239 = vadd.f32 %v222, %v231
      %v240 = vadd.f32 %v223, %v232
      %v241 = vadd.f32 %v224, %v233
      %v242 = vadd.f32 %v225, %v234
      %s243 = scalar_lea.vmem %s168, 432
      %v244 = vld [vmem:[%s243] sm:$0xff]
      %v245 = vld [vmem:[%s243 + $0x10] sm:$0xff]
      %v246 = vld [vmem:[%s243 + $0x20] sm:$0xff]
      %v247 = vld [vmem:[%s243 + $0x30] sm:$0xff]
      %v248 = vld [vmem:[%s243 + $0x40] sm:$0xff]
      %v249 = vld [vmem:[%s243 + $0x50] sm:$0xff]
      %v250 = vld [vmem:[%s243 + $0x60] sm:$0xff]
      %v251 = vld [vmem:[%s243 + $0x70] sm:$0xff]
      %v252 = vadd.f32 %v235, %v244
      %v253 = vadd.f32 %v236, %v245
      %v254 = vadd.f32 %v237, %v246
      %v255 = vadd.f32 %v238, %v247
      %v256 = vadd.f32 %v239, %v248
      %v257 = vadd.f32 %v240, %v249
      %v258 = vadd.f32 %v241, %v250
      %v259 = vadd.f32 %v242, %v251
      %s260 = scalar_lea.vmem [#allocation2], 16
      %261 = vst.msk [vmem:[%s260 + $0x1] sm:$0xff] %vm174, %v252
      %262 = vst.msk [vmem:[%s260 + $0x11] sm:$0xff] %vm174, %v253
      %263 = vst.msk [vmem:[%s260 + $0x21] sm:$0xff] %vm174, %v254
      %264 = vst.msk [vmem:[%s260 + $0x31] sm:$0xff] %vm174, %v255
      %265 = vst.msk [vmem:[%s260 + $0x41] sm:$0xff] %vm174, %v256
      %266 = vst.msk [vmem:[%s260 + $0x51] sm:$0xff] %vm174, %v257
      %267 = vst.msk [vmem:[%s260 + $0x61] sm:$0xff] %vm174, %v258
      %268 = vst.msk [vmem:[%s260 + $0x71] sm:$0xff] %vm174, %v259
      %v269 = vld [vmem:[%s200] sm:$0xff]
      %v270 = vld [vmem:[%s200 + $0x10] sm:$0xff]
      %v271 = vld [vmem:[%s200 + $0x20] sm:$0xff]
      %v272 = vld [vmem:[%s200 + $0x30] sm:$0xff]
      %v273 = vld [vmem:[%s200 + $0x40] sm:$0xff]
      %v274 = vld [vmem:[%s200 + $0x50] sm:$0xff]
      %v275 = vld [vmem:[%s200 + $0x60] sm:$0xff]
      %v276 = vld [vmem:[%s200 + $0x70] sm:$0xff]
      %v277 = vld [vmem:[%s209] sm:$0xff]
      %v278 = vld [vmem:[%s209 + $0x10] sm:$0xff]
      %v279 = vld [vmem:[%s209 + $0x20] sm:$0xff]
      %v280 = vld [vmem:[%s209 + $0x30] sm:$0xff]
      %v281 = vld [vmem:[%s209 + $0x40] sm:$0xff]
      %v282 = vld [vmem:[%s209 + $0x50] sm:$0xff]
      %v283 = vld [vmem:[%s209 + $0x60] sm:$0xff]
      %v284 = vld [vmem:[%s209 + $0x70] sm:$0xff]
      %v285 = vadd.f32 %v269, %v277
      %v286 = vadd.f32 %v270, %v278
      %v287 = vadd.f32 %v271, %v279
      %v288 = vadd.f32 %v272, %v280
      %v289 = vadd.f32 %v273, %v281
      %v290 = vadd.f32 %v274, %v282
      %v291 = vadd.f32 %v275, %v283
      %v292 = vadd.f32 %v276, %v284
      %v293 = vld [vmem:[%s226] sm:$0xff]
      %v294 = vld [vmem:[%s226 + $0x10] sm:$0xff]
      %v295 = vld [vmem:[%s226 + $0x20] sm:$0xff]
      %v296 = vld [vmem:[%s226 + $0x30] sm:$0xff]
      %v297 = vld [vmem:[%s226 + $0x40] sm:$0xff]
      %v298 = vld [vmem:[%s226 + $0x50] sm:$0xff]
      %v299 = vld [vmem:[%s226 + $0x60] sm:$0xff]
      %v300 = vld [vmem:[%s226 + $0x70] sm:$0xff]
      %v301 = vadd.f32 %v285, %v293
      %v302 = vadd.f32 %v286, %v294
      %v303 = vadd.f32 %v287, %v295
      %v304 = vadd.f32 %v288, %v296
      %v305 = vadd.f32 %v289, %v297
      %v306 = vadd.f32 %v290, %v298
      %v307 = vadd.f32 %v291, %v299
      %v308 = vadd.f32 %v292, %v300
      %v309 = vld [vmem:[%s243] sm:$0xff]
      %v310 = vld [vmem:[%s243 + $0x10] sm:$0xff]
      %v311 = vld [vmem:[%s243 + $0x20] sm:$0xff]
      %v312 = vld [vmem:[%s243 + $0x30] sm:$0xff]
      %v313 = vld [vmem:[%s243 + $0x40] sm:$0xff]
      %v314 = vld [vmem:[%s243 + $0x50] sm:$0xff]
      %v315 = vld [vmem:[%s243 + $0x60] sm:$0xff]
      %v316 = vld [vmem:[%s243 + $0x70] sm:$0xff]
      %v317 = vadd.f32 %v301, %v309
      %v318 = vadd.f32 %v302, %v310
      %v319 = vadd.f32 %v303, %v311
      %v320 = vadd.f32 %v304, %v312
      %v321 = vadd.f32 %v305, %v313
      %v322 = vadd.f32 %v306, %v314
      %v323 = vadd.f32 %v307, %v315
      %v324 = vadd.f32 %v308, %v316
      %s325 = scalar_lea.vmem [#allocation2], 160
      %326 = vst.msk [vmem:[%s325] sm:$0xff] %vm174, %v317
      %327 = vst.msk [vmem:[%s325 + $0x10] sm:$0xff] %vm174, %v318
      %328 = vst.msk [vmem:[%s325 + $0x20] sm:$0xff] %vm174, %v319
      %329 = vst.msk [vmem:[%s325 + $0x30] sm:$0xff] %vm174, %v320
      %330 = vst.msk [vmem:[%s325 + $0x40] sm:$0xff] %vm174, %v321
      %331 = vst.msk [vmem:[%s325 + $0x50] sm:$0xff] %vm174, %v322
      %332 = vst.msk [vmem:[%s325 + $0x60] sm:$0xff] %vm174, %v323
      %333 = vst.msk [vmem:[%s325 + $0x70] sm:$0xff] %vm174, %v324
      %v334 = vld [vmem:[%s168 + $0x1] sm:$0xff]
      %v335 = vld [vmem:[%s168 + $0x11] sm:$0xff]
      %v336 = vld [vmem:[%s168 + $0x21] sm:$0xff]
      %v337 = vld [vmem:[%s168 + $0x31] sm:$0xff]
      %v338 = vld [vmem:[%s168 + $0x41] sm:$0xff]
      %v339 = vld [vmem:[%s168 + $0x51] sm:$0xff]
      %v340 = vld [vmem:[%s168 + $0x61] sm:$0xff]
      %v341 = vld [vmem:[%s168 + $0x71] sm:$0xff]
      %s342 = scalar_lea.vmem %s168, 144
      %v343 = vld [vmem:[%s342] sm:$0xff]
      %v344 = vld [vmem:[%s342 + $0x10] sm:$0xff]
      %v345 = vld [vmem:[%s342 + $0x20] sm:$0xff]
      %v346 = vld [vmem:[%s342 + $0x30] sm:$0xff]
      %v347 = vld [vmem:[%s342 + $0x40] sm:$0xff]
      %v348 = vld [vmem:[%s342 + $0x50] sm:$0xff]
      %v349 = vld [vmem:[%s342 + $0x60] sm:$0xff]
      %v350 = vld [vmem:[%s342 + $0x70] sm:$0xff]
      %v351 = vadd.f32 %v334, %v343
      %v352 = vadd.f32 %v335, %v344
      %v353 = vadd.f32 %v336, %v345
      %v354 = vadd.f32 %v337, %v346
      %v355 = vadd.f32 %v338, %v347
      %v356 = vadd.f32 %v339, %v348
      %v357 = vadd.f32 %v340, %v349
      %v358 = vadd.f32 %v341, %v350
      %v359 = vld [vmem:[%s226 + $0x1] sm:$0xff]
      %v360 = vld [vmem:[%s226 + $0x11] sm:$0xff]
      %v361 = vld [vmem:[%s226 + $0x21] sm:$0xff]
      %v362 = vld [vmem:[%s226 + $0x31] sm:$0xff]
      %v363 = vld [vmem:[%s226 + $0x41] sm:$0xff]
      %v364 = vld [vmem:[%s226 + $0x51] sm:$0xff]
      %v365 = vld [vmem:[%s226 + $0x61] sm:$0xff]
      %v366 = vld [vmem:[%s226 + $0x71] sm:$0xff]
      %v367 = vadd.f32 %v351, %v359
      %v368 = vadd.f32 %v352, %v360
      %v369 = vadd.f32 %v353, %v361
      %v370 = vadd.f32 %v354, %v362
      %v371 = vadd.f32 %v355, %v363
      %v372 = vadd.f32 %v356, %v364
      %v373 = vadd.f32 %v357, %v365
      %v374 = vadd.f32 %v358, %v366
      %v375 = vld [vmem:[%s243] sm:$0xff]
      %v376 = vld [vmem:[%s243 + $0x10] sm:$0xff]
      %v377 = vld [vmem:[%s243 + $0x20] sm:$0xff]
      %v378 = vld [vmem:[%s243 + $0x30] sm:$0xff]
      %v379 = vld [vmem:[%s243 + $0x40] sm:$0xff]
      %v380 = vld [vmem:[%s243 + $0x50] sm:$0xff]
      %v381 = vld [vmem:[%s243 + $0x60] sm:$0xff]
      %v382 = vld [vmem:[%s243 + $0x70] sm:$0xff]
      %v383 = vadd.f32 %v367, %v375
      %v384 = vadd.f32 %v368, %v376
      %v385 = vadd.f32 %v369, %v377
      %v386 = vadd.f32 %v370, %v378
      %v387 = vadd.f32 %v371, %v379
      %v388 = vadd.f32 %v372, %v380
      %v389 = vadd.f32 %v373, %v381
      %v390 = vadd.f32 %v374, %v382
      %391 = vst.msk [vmem:[%s190 + $0x1] sm:$0xff] %vm174, %v383
      %392 = vst.msk [vmem:[%s190 + $0x11] sm:$0xff] %vm174, %v384
      %393 = vst.msk [vmem:[%s190 + $0x21] sm:$0xff] %vm174, %v385
      %394 = vst.msk [vmem:[%s190 + $0x31] sm:$0xff] %vm174, %v386
      %395 = vst.msk [vmem:[%s190 + $0x41] sm:$0xff] %vm174, %v387
      %396 = vst.msk [vmem:[%s190 + $0x51] sm:$0xff] %vm174, %v388
      %397 = vst.msk [vmem:[%s190 + $0x61] sm:$0xff] %vm174, %v389
      %398 = vst.msk [vmem:[%s190 + $0x71] sm:$0xff] %vm174, %v390
      %v399 = vld [vmem:[%s168] sm:$0xff]
      %v400 = vld [vmem:[%s168 + $0x10] sm:$0xff]
      %v401 = vld [vmem:[%s168 + $0x20] sm:$0xff]
      %v402 = vld [vmem:[%s168 + $0x30] sm:$0xff]
      %v403 = vld [vmem:[%s168 + $0x40] sm:$0xff]
      %v404 = vld [vmem:[%s168 + $0x50] sm:$0xff]
      %v405 = vld [vmem:[%s168 + $0x60] sm:$0xff]
      %v406 = vld [vmem:[%s168 + $0x70] sm:$0xff]
      %v407 = vld [vmem:[%s342] sm:$0xff]
      %v408 = vld [vmem:[%s342 + $0x10] sm:$0xff]
      %v409 = vld [vmem:[%s342 + $0x20] sm:$0xff]
      %v410 = vld [vmem:[%s342 + $0x30] sm:$0xff]
      %v411 = vld [vmem:[%s342 + $0x40] sm:$0xff]
      %v412 = vld [vmem:[%s342 + $0x50] sm:$0xff]
      %v413 = vld [vmem:[%s342 + $0x60] sm:$0xff]
      %v414 = vld [vmem:[%s342 + $0x70] sm:$0xff]
      %v415 = vadd.f32 %v399, %v407
      %v416 = vadd.f32 %v400, %v408
      %v417 = vadd.f32 %v401, %v409
      %v418 = vadd.f32 %v402, %v410
      %v419 = vadd.f32 %v403, %v411
      %v420 = vadd.f32 %v404, %v412
      %v421 = vadd.f32 %v405, %v413
      %v422 = vadd.f32 %v406, %v414
      %v423 = vld [vmem:[%s226] sm:$0xff]
      %v424 = vld [vmem:[%s226 + $0x10] sm:$0xff]
      %v425 = vld [vmem:[%s226 + $0x20] sm:$0xff]
      %v426 = vld [vmem:[%s226 + $0x30] sm:$0xff]
      %v427 = vld [vmem:[%s226 + $0x40] sm:$0xff]
      %v428 = vld [vmem:[%s226 + $0x50] sm:$0xff]
      %v429 = vld [vmem:[%s226 + $0x60] sm:$0xff]
      %v430 = vld [vmem:[%s226 + $0x70] sm:$0xff]
      %v431 = vadd.f32 %v415, %v423
      %v432 = vadd.f32 %v416, %v424
      %v433 = vadd.f32 %v417, %v425
      %v434 = vadd.f32 %v418, %v426
      %v435 = vadd.f32 %v419, %v427
      %v436 = vadd.f32 %v420, %v428
      %v437 = vadd.f32 %v421, %v429
      %v438 = vadd.f32 %v422, %v430
      %v439 = vld [vmem:[%s243] sm:$0xff]
      %v440 = vld [vmem:[%s243 + $0x10] sm:$0xff]
      %v441 = vld [vmem:[%s243 + $0x20] sm:$0xff]
      %v442 = vld [vmem:[%s243 + $0x30] sm:$0xff]
      %v443 = vld [vmem:[%s243 + $0x40] sm:$0xff]
      %v444 = vld [vmem:[%s243 + $0x50] sm:$0xff]
      %v445 = vld [vmem:[%s243 + $0x60] sm:$0xff]
      %v446 = vld [vmem:[%s243 + $0x70] sm:$0xff]
      %v447 = vadd.f32 %v431, %v439
      %v448 = vadd.f32 %v432, %v440
      %v449 = vadd.f32 %v433, %v441
      %v450 = vadd.f32 %v434, %v442
      %v451 = vadd.f32 %v435, %v443
      %v452 = vadd.f32 %v436, %v444
      %v453 = vadd.f32 %v437, %v445
      %v454 = vadd.f32 %v438, %v446
      %s455 = scalar_lea.vmem [#allocation2], 432
      %456 = vst.msk [vmem:[%s455] sm:$0xff] %vm174, %v447
      %457 = vst.msk [vmem:[%s455 + $0x10] sm:$0xff] %vm174, %v448
      %458 = vst.msk [vmem:[%s455 + $0x20] sm:$0xff] %vm174, %v449
      %459 = vst.msk [vmem:[%s455 + $0x30] sm:$0xff] %vm174, %v450
      %460 = vst.msk [vmem:[%s455 + $0x40] sm:$0xff] %vm174, %v451
      %461 = vst.msk [vmem:[%s455 + $0x50] sm:$0xff] %vm174, %v452
      %462 = vst.msk [vmem:[%s455 + $0x60] sm:$0xff] %vm174, %v453
      %463 = vst.msk [vmem:[%s455 + $0x70] sm:$0xff] %vm174, %v454
      %v464 = vld [vmem:[#allocation2] sm:$0xff]
      %v465 = vld [vmem:[#allocation2 + $0x10] sm:$0xff]
      %v466 = vld [vmem:[#allocation2 + $0x20] sm:$0xff]
      %v467 = vld [vmem:[#allocation2 + $0x30] sm:$0xff]
      %v468 = vld [vmem:[#allocation2 + $0x40] sm:$0xff]
      %v469 = vld [vmem:[#allocation2 + $0x50] sm:$0xff]
      %v470 = vld [vmem:[#allocation2 + $0x60] sm:$0xff]
      %v471 = vld [vmem:[#allocation2 + $0x70] sm:$0xff]
      %v472 = vld [vmem:[%s187] sm:$0xff]
      %v473 = vld [vmem:[%s187 + $0x10] sm:$0xff]
      %v474 = vld [vmem:[%s187 + $0x20] sm:$0xff]
      %v475 = vld [vmem:[%s187 + $0x30] sm:$0xff]
      %v476 = vld [vmem:[%s187 + $0x40] sm:$0xff]
      %v477 = vld [vmem:[%s187 + $0x50] sm:$0xff]
      %v478 = vld [vmem:[%s187 + $0x60] sm:$0xff]
      %v479 = vld [vmem:[%s187 + $0x70] sm:$0xff]
      %v480 = vld [vmem:[#allocation2 + $0x1] sm:$0xff]
      %v481 = vld [vmem:[#allocation2 + $0x11] sm:$0xff]
      %v482 = vld [vmem:[#allocation2 + $0x21] sm:$0xff]
      %v483 = vld [vmem:[#allocation2 + $0x31] sm:$0xff]
      %v484 = vld [vmem:[#allocation2 + $0x41] sm:$0xff]
      %v485 = vld [vmem:[#allocation2 + $0x51] sm:$0xff]
      %v486 = vld [vmem:[#allocation2 + $0x61] sm:$0xff]
      %v487 = vld [vmem:[#allocation2 + $0x71] sm:$0xff]
      %v488 = vld [vmem:[%s190] sm:$0xff]
      %v489 = vld [vmem:[%s190 + $0x10] sm:$0xff]
      %v490 = vld [vmem:[%s190 + $0x20] sm:$0xff]
      %v491 = vld [vmem:[%s190 + $0x30] sm:$0xff]
      %v492 = vld [vmem:[%s190 + $0x40] sm:$0xff]
      %v493 = vld [vmem:[%s190 + $0x50] sm:$0xff]
      %v494 = vld [vmem:[%s190 + $0x60] sm:$0xff]
      %v495 = vld [vmem:[%s190 + $0x70] sm:$0xff]
      %v496 = vld [vmem:[%s455] sm:$0xff]
      %v497 = vld [vmem:[%s455 + $0x10] sm:$0xff]
      %v498 = vld [vmem:[%s455 + $0x20] sm:$0xff]
      %v499 = vld [vmem:[%s455 + $0x30] sm:$0xff]
      %v500 = vld [vmem:[%s455 + $0x40] sm:$0xff]
      %v501 = vld [vmem:[%s455 + $0x50] sm:$0xff]
      %v502 = vld [vmem:[%s455 + $0x60] sm:$0xff]
      %v503 = vld [vmem:[%s455 + $0x70] sm:$0xff]
      %v504 = vld [vmem:[%s190 + $0x1] sm:$0xff]
      %v505 = vld [vmem:[%s190 + $0x11] sm:$0xff]
      %v506 = vld [vmem:[%s190 + $0x21] sm:$0xff]
      %v507 = vld [vmem:[%s190 + $0x31] sm:$0xff]
      %v508 = vld [vmem:[%s190 + $0x41] sm:$0xff]
      %v509 = vld [vmem:[%s190 + $0x51] sm:$0xff]
      %v510 = vld [vmem:[%s190 + $0x61] sm:$0xff]
      %v511 = vld [vmem:[%s190 + $0x71] sm:$0xff]
      %v512 = vld [vmem:[%s260] sm:$0xff]
      %v513 = vld [vmem:[%s260 + $0x10] sm:$0xff]
      %v514 = vld [vmem:[%s260 + $0x20] sm:$0xff]
      %v515 = vld [vmem:[%s260 + $0x30] sm:$0xff]
      %v516 = vld [vmem:[%s260 + $0x40] sm:$0xff]
      %v517 = vld [vmem:[%s260 + $0x50] sm:$0xff]
      %v518 = vld [vmem:[%s260 + $0x60] sm:$0xff]
      %v519 = vld [vmem:[%s260 + $0x70] sm:$0xff]
      %v520 = vld [vmem:[%s325] sm:$0xff]
      %v521 = vld [vmem:[%s325 + $0x10] sm:$0xff]
      %v522 = vld [vmem:[%s325 + $0x20] sm:$0xff]
      %v523 = vld [vmem:[%s325 + $0x30] sm:$0xff]
      %v524 = vld [vmem:[%s325 + $0x40] sm:$0xff]
      %v525 = vld [vmem:[%s325 + $0x50] sm:$0xff]
      %v526 = vld [vmem:[%s325 + $0x60] sm:$0xff]
      %v527 = vld [vmem:[%s325 + $0x70] sm:$0xff]
      %v528 = vld [vmem:[%s260 + $0x1] sm:$0xff]
      %v529 = vld [vmem:[%s260 + $0x11] sm:$0xff]
      %v530 = vld [vmem:[%s260 + $0x21] sm:$0xff]
      %v531 = vld [vmem:[%s260 + $0x31] sm:$0xff]
      %v532 = vld [vmem:[%s260 + $0x41] sm:$0xff]
      %v533 = vld [vmem:[%s260 + $0x51] sm:$0xff]
      %v534 = vld [vmem:[%s260 + $0x61] sm:$0xff]
      %v535 = vld [vmem:[%s260 + $0x71] sm:$0xff]
      %v536 = vld [vmem:[%s1] sm:$0xff]
      %v537 = vld [vmem:[%s2] sm:$0xff]
      %v539 = vsel %vm174, %v536, 0
      %v542 = vsel %vm174, %v464, 0
      %v545 = vsel %vm174, %v465, 0
      %v548 = vsel %vm174, %v466, 0
      %v551 = vsel %vm174, %v467, 0
      %v554 = vsel %vm174, %v468, 0
      %v557 = vsel %vm174, %v469, 0
      %v560 = vsel %vm174, %v470, 0
      %v563 = vsel %vm174, %v471, 0
      %565 = vmatpush.xpose.msra.mxu0 0.0
      %566 = vmatpush.xpose.msra.mxu0 0.0
      %567 = vmatpush.xpose.msra.mxu0 0.0
      %568 = vmatpush.xpose.msra.mxu0 0.0
      %569 = vmatpush.xpose.msra.mxu0 0.0
      %570 = vmatpush.xpose.msra.mxu0 0.0
      %571 = vmatpush.xpose.msra.mxu0 0.0
      %572 = vmatpush.xpose.msra.mxu0 0.0
      %573 = vmatpush.xpose.msra.mxu0 %v563
      %574 = vmatpush.xpose.msra.mxu0 %v560
      %575 = vmatpush.xpose.msra.mxu0 %v557
      %576 = vmatpush.xpose.msra.mxu0 %v554
      %577 = vmatpush.xpose.msra.mxu0 %v551
      %578 = vmatpush.xpose.msra.mxu0 %v548
      %579 = vmatpush.xpose.msra.mxu0 %v545
      %580 = vmatpush.xpose.msra.mxu0 %v542
      %581 = vmatmul.f32.gmra.mxu0 %v539
      %v582 = vpop.f32.mrf.mxu0
      %v583 = vadd.f32 0.0, %v582
      %584 = vdwg.mxu0
      %v585 = vadd.f32 %v537, %v583
      %586 = vrot.lane.b32.xlu0 %v536, 124
      %v587 = vpop.permute.xlu0 %586
      %v588 = vsel %vm174, %v587, 0
      %v591 = vsel %vm174, %v472, 0
      %v594 = vsel %vm174, %v473, 0
      %v597 = vsel %vm174, %v474, 0
      %v600 = vsel %vm174, %v475, 0
      %v603 = vsel %vm174, %v476, 0
      %v606 = vsel %vm174, %v477, 0
      %v609 = vsel %vm174, %v478, 0
      %v612 = vsel %vm174, %v479, 0
      %614 = vmatpush.xpose.msra.mxu0 0.0
      %615 = vmatpush.xpose.msra.mxu0 0.0
      %616 = vmatpush.xpose.msra.mxu0 0.0
      %617 = vmatpush.xpose.msra.mxu0 0.0
      %618 = vmatpush.xpose.msra.mxu0 0.0
      %619 = vmatpush.xpose.msra.mxu0 0.0
      %620 = vmatpush.xpose.msra.mxu0 0.0
      %621 = vmatpush.xpose.msra.mxu0 0.0
      %622 = vmatpush.xpose.msra.mxu0 %v612
      %623 = vmatpush.xpose.msra.mxu0 %v609
      %624 = vmatpush.xpose.msra.mxu0 %v606
      %625 = vmatpush.xpose.msra.mxu0 %v603
      %626 = vmatpush.xpose.msra.mxu0 %v600
      %627 = vmatpush.xpose.msra.mxu0 %v597
      %628 = vmatpush.xpose.msra.mxu0 %v594
      %629 = vmatpush.xpose.msra.mxu0 %v591
      %630 = vmatmul.f32.gmra.mxu0 %v588
      %v631 = vpop.f32.mrf.mxu0
      %v632 = vadd.f32 0.0, %v631
      %633 = vdwg.mxu0
      %v634 = vadd.f32 %v585, %v632
      %635 = vrot.lane.b32.xlu0 %v536, 120
      %v636 = vpop.permute.xlu0 %635
      %v637 = vsel %vm174, %v636, 0
      %v640 = vsel %vm174, %v480, 0
      %v643 = vsel %vm174, %v481, 0
      %v646 = vsel %vm174, %v482, 0
      %v649 = vsel %vm174, %v483, 0
      %v652 = vsel %vm174, %v484, 0
      %v655 = vsel %vm174, %v485, 0
      %v658 = vsel %vm174, %v486, 0
      %v661 = vsel %vm174, %v487, 0
      %663 = vmatpush.xpose.msra.mxu0 0.0
      %664 = vmatpush.xpose.msra.mxu0 0.0
      %665 = vmatpush.xpose.msra.mxu0 0.0
      %666 = vmatpush.xpose.msra.mxu0 0.0
      %667 = vmatpush.xpose.msra.mxu0 0.0
      %668 = vmatpush.xpose.msra.mxu0 0.0
      %669 = vmatpush.xpose.msra.mxu0 0.0
      %670 = vmatpush.xpose.msra.mxu0 0.0
      %671 = vmatpush.xpose.msra.mxu0 %v661
      %672 = vmatpush.xpose.msra.mxu0 %v658
      %673 = vmatpush.xpose.msra.mxu0 %v655
      %674 = vmatpush.xpose.msra.mxu0 %v652
      %675 = vmatpush.xpose.msra.mxu0 %v649
      %676 = vmatpush.xpose.msra.mxu0 %v646
      %677 = vmatpush.xpose.msra.mxu0 %v643
      %678 = vmatpush.xpose.msra.mxu0 %v640
      %679 = vmatmul.f32.gmra.mxu0 %v637
      %v680 = vpop.f32.mrf.mxu0
      %v681 = vadd.f32 0.0, %v680
      %682 = vdwg.mxu0
      %v683 = vadd.f32 %v634, %v681
      %684 = vrot.lane.b32.xlu0 %v536, 116
      %v685 = vpop.permute.xlu0 %684
      %v686 = vsel %vm174, %v685, 0
      %v689 = vsel %vm174, %v488, 0
      %v692 = vsel %vm174, %v489, 0
      %v695 = vsel %vm174, %v490, 0
      %v698 = vsel %vm174, %v491, 0
      %v701 = vsel %vm174, %v492, 0
      %v704 = vsel %vm174, %v493, 0
      %v707 = vsel %vm174, %v494, 0
      %v710 = vsel %vm174, %v495, 0
      %712 = vmatpush.xpose.msra.mxu0 0.0
      %713 = vmatpush.xpose.msra.mxu0 0.0
      %714 = vmatpush.xpose.msra.mxu0 0.0
      %715 = vmatpush.xpose.msra.mxu0 0.0
      %716 = vmatpush.xpose.msra.mxu0 0.0
      %717 = vmatpush.xpose.msra.mxu0 0.0
      %718 = vmatpush.xpose.msra.mxu0 0.0
      %719 = vmatpush.xpose.msra.mxu0 0.0
      %720 = vmatpush.xpose.msra.mxu0 %v710
      %721 = vmatpush.xpose.msra.mxu0 %v707
      %722 = vmatpush.xpose.msra.mxu0 %v704
      %723 = vmatpush.xpose.msra.mxu0 %v701
      %724 = vmatpush.xpose.msra.mxu0 %v698
      %725 = vmatpush.xpose.msra.mxu0 %v695
      %726 = vmatpush.xpose.msra.mxu0 %v692
      %727 = vmatpush.xpose.msra.mxu0 %v689
      %728 = vmatmul.f32.gmra.mxu0 %v686
      %v729 = vpop.f32.mrf.mxu0
      %v730 = vadd.f32 0.0, %v729
      %731 = vdwg.mxu0
      %v732 = vadd.f32 %v683, %v730
      %733 = vrot.lane.b32.xlu0 %v536, 112
      %v734 = vpop.permute.xlu0 %733
      %v735 = vsel %vm174, %v734, 0
      %v738 = vsel %vm174, %v496, 0
      %v741 = vsel %vm174, %v497, 0
      %v744 = vsel %vm174, %v498, 0
      %v747 = vsel %vm174, %v499, 0
      %v750 = vsel %vm174, %v500, 0
      %v753 = vsel %vm174, %v501, 0
      %v756 = vsel %vm174, %v502, 0
      %v759 = vsel %vm174, %v503, 0
      %761 = vmatpush.xpose.msra.mxu0 0.0
      %762 = vmatpush.xpose.msra.mxu0 0.0
      %763 = vmatpush.xpose.msra.mxu0 0.0
      %764 = vmatpush.xpose.msra.mxu0 0.0
      %765 = vmatpush.xpose.msra.mxu0 0.0
      %766 = vmatpush.xpose.msra.mxu0 0.0
      %767 = vmatpush.xpose.msra.mxu0 0.0
      %768 = vmatpush.xpose.msra.mxu0 0.0
      %769 = vmatpush.xpose.msra.mxu0 %v759
      %770 = vmatpush.xpose.msra.mxu0 %v756
      %771 = vmatpush.xpose.msra.mxu0 %v753
      %772 = vmatpush.xpose.msra.mxu0 %v750
      %773 = vmatpush.xpose.msra.mxu0 %v747
      %774 = vmatpush.xpose.msra.mxu0 %v744
      %775 = vmatpush.xpose.msra.mxu0 %v741
      %776 = vmatpush.xpose.msra.mxu0 %v738
      %777 = vmatmul.f32.gmra.mxu0 %v735
      %v778 = vpop.f32.mrf.mxu0
      %v779 = vadd.f32 0.0, %v778
      %780 = vdwg.mxu0
      %v781 = vadd.f32 %v732, %v779
      %782 = vrot.lane.b32.xlu0 %v536, 108
      %v783 = vpop.permute.xlu0 %782
      %v784 = vsel %vm174, %v783, 0
      %v787 = vsel %vm174, %v504, 0
      %v790 = vsel %vm174, %v505, 0
      %v793 = vsel %vm174, %v506, 0
      %v796 = vsel %vm174, %v507, 0
      %v799 = vsel %vm174, %v508, 0
      %v802 = vsel %vm174, %v509, 0
      %v805 = vsel %vm174, %v510, 0
      %v808 = vsel %vm174, %v511, 0
      %810 = vmatpush.xpose.msra.mxu0 0.0
      %811 = vmatpush.xpose.msra.mxu0 0.0
      %812 = vmatpush.xpose.msra.mxu0 0.0
      %813 = vmatpush.xpose.msra.mxu0 0.0
      %814 = vmatpush.xpose.msra.mxu0 0.0
      %815 = vmatpush.xpose.msra.mxu0 0.0
      %816 = vmatpush.xpose.msra.mxu0 0.0
      %817 = vmatpush.xpose.msra.mxu0 0.0
      %818 = vmatpush.xpose.msra.mxu0 %v808
      %819 = vmatpush.xpose.msra.mxu0 %v805
      %820 = vmatpush.xpose.msra.mxu0 %v802
      %821 = vmatpush.xpose.msra.mxu0 %v799
      %822 = vmatpush.xpose.msra.mxu0 %v796
      %823 = vmatpush.xpose.msra.mxu0 %v793
      %824 = vmatpush.xpose.msra.mxu0 %v790
      %825 = vmatpush.xpose.msra.mxu0 %v787
      %826 = vmatmul.f32.gmra.mxu0 %v784
      %v827 = vpop.f32.mrf.mxu0
      %v828 = vadd.f32 0.0, %v827
      %829 = vdwg.mxu0
      %v830 = vadd.f32 %v781, %v828
      %831 = vrot.lane.b32.xlu0 %v536, 104
      %v832 = vpop.permute.xlu0 %831
      %v833 = vsel %vm174, %v832, 0
      %v836 = vsel %vm174, %v512, 0
      %v839 = vsel %vm174, %v513, 0
      %v842 = vsel %vm174, %v514, 0
      %v845 = vsel %vm174, %v515, 0
      %v848 = vsel %vm174, %v516, 0
      %v851 = vsel %vm174, %v517, 0
      %v854 = vsel %vm174, %v518, 0
      %v857 = vsel %vm174, %v519, 0
      %859 = vmatpush.xpose.msra.mxu0 0.0
      %860 = vmatpush.xpose.msra.mxu0 0.0
      %861 = vmatpush.xpose.msra.mxu0 0.0
      %862 = vmatpush.xpose.msra.mxu0 0.0
      %863 = vmatpush.xpose.msra.mxu0 0.0
      %864 = vmatpush.xpose.msra.mxu0 0.0
      %865 = vmatpush.xpose.msra.mxu0 0.0
      %866 = vmatpush.xpose.msra.mxu0 0.0
      %867 = vmatpush.xpose.msra.mxu0 %v857
      %868 = vmatpush.xpose.msra.mxu0 %v854
      %869 = vmatpush.xpose.msra.mxu0 %v851
      %870 = vmatpush.xpose.msra.mxu0 %v848
      %871 = vmatpush.xpose.msra.mxu0 %v845
      %872 = vmatpush.xpose.msra.mxu0 %v842
      %873 = vmatpush.xpose.msra.mxu0 %v839
      %874 = vmatpush.xpose.msra.mxu0 %v836
      %875 = vmatmul.f32.gmra.mxu0 %v833
      %v876 = vpop.f32.mrf.mxu0
      %v877 = vadd.f32 0.0, %v876
      %878 = vdwg.mxu0
      %v879 = vadd.f32 %v830, %v877
      %880 = vrot.lane.b32.xlu0 %v536, 100
      %v881 = vpop.permute.xlu0 %880
      %v882 = vsel %vm174, %v881, 0
      %v885 = vsel %vm174, %v520, 0
      %v888 = vsel %vm174, %v521, 0
      %v891 = vsel %vm174, %v522, 0
      %v894 = vsel %vm174, %v523, 0
      %v897 = vsel %vm174, %v524, 0
      %v900 = vsel %vm174, %v525, 0
      %v903 = vsel %vm174, %v526, 0
      %v906 = vsel %vm174, %v527, 0
      %908 = vmatpush.xpose.msra.mxu0 0.0
      %909 = vmatpush.xpose.msra.mxu0 0.0
      %910 = vmatpush.xpose.msra.mxu0 0.0
      %911 = vmatpush.xpose.msra.mxu0 0.0
      %912 = vmatpush.xpose.msra.mxu0 0.0
      %913 = vmatpush.xpose.msra.mxu0 0.0
      %914 = vmatpush.xpose.msra.mxu0 0.0
      %915 = vmatpush.xpose.msra.mxu0 0.0
      %916 = vmatpush.xpose.msra.mxu0 %v906
      %917 = vmatpush.xpose.msra.mxu0 %v903
      %918 = vmatpush.xpose.msra.mxu0 %v900
      %919 = vmatpush.xpose.msra.mxu0 %v897
      %920 = vmatpush.xpose.msra.mxu0 %v894
      %921 = vmatpush.xpose.msra.mxu0 %v891
      %922 = vmatpush.xpose.msra.mxu0 %v888
      %923 = vmatpush.xpose.msra.mxu0 %v885
      %924 = vmatmul.f32.gmra.mxu0 %v882
      %v925 = vpop.f32.mrf.mxu0
      %v926 = vadd.f32 0.0, %v925
      %927 = vdwg.mxu0
      %v928 = vadd.f32 %v879, %v926
      %929 = vrot.lane.b32.xlu0 %v536, 96
      %v930 = vpop.permute.xlu0 %929
      %v931 = vsel %vm174, %v930, 0
      %v934 = vsel %vm174, %v528, 0
      %v937 = vsel %vm174, %v529, 0
      %v940 = vsel %vm174, %v530, 0
      %v943 = vsel %vm174, %v531, 0
      %v946 = vsel %vm174, %v532, 0
      %v949 = vsel %vm174, %v533, 0
      %v952 = vsel %vm174, %v534, 0
      %v955 = vsel %vm174, %v535, 0
      %957 = vmatpush.xpose.msra.mxu0 0.0
      %958 = vmatpush.xpose.msra.mxu0 0.0
      %959 = vmatpush.xpose.msra.mxu0 0.0
      %960 = vmatpush.xpose.msra.mxu0 0.0
      %961 = vmatpush.xpose.msra.mxu0 0.0
      %962 = vmatpush.xpose.msra.mxu0 0.0
      %963 = vmatpush.xpose.msra.mxu0 0.0
      %964 = vmatpush.xpose.msra.mxu0 0.0
      %965 = vmatpush.xpose.msra.mxu0 %v955
      %966 = vmatpush.xpose.msra.mxu0 %v952
      %967 = vmatpush.xpose.msra.mxu0 %v949
      %968 = vmatpush.xpose.msra.mxu0 %v946
      %969 = vmatpush.xpose.msra.mxu0 %v943
      %970 = vmatpush.xpose.msra.mxu0 %v940
      %971 = vmatpush.xpose.msra.mxu0 %v937
      %972 = vmatpush.xpose.msra.mxu0 %v934
      %973 = vmatmul.f32.gmra.mxu0 %v931
      %v974 = vpop.f32.mrf.mxu0
      %v975 = vadd.f32 0.0, %v974
      %976 = vdwg.mxu0
      %v977 = vadd.f32 %v928, %v975
      %vm978 = vcmask 523264
      %979 = vst.msk [vmem:[%s173] sm:$0xff] %vm978, %v977
      %p980 = scmp.lt.s32.totalorder %s14, 1
      %s981 = scalar_select %p980, %s14, 1
      %s982 = smul.addr %s981, 8
      %s983 = scalar_lea.vmem %s3, %s982
      // Predicated region
      $region33: #{_lambda_.1} parent=31 // pred_check
        %p984 = pneg %p100
      $region34: #{_lambda_.1} parent=31 // pred_check_branch
        %986 = sbr.rel (%p984) target = $region36
      $region35: #{_lambda_.1} parent=31 // pred_region
        _
      $region36: #{_lambda_.1} parent=31 // pred_fallthru
        _
    $region32: #{_lambda_.1} parent=5 // pred_fallthru
      _
    %p987 = scmp.le.s32.totalorder 2, %s9
    // Predicated region
    $region37: #{_lambda_.1} parent=5 // pred_check
      %p988 = pneg %p987
    $region38: #{_lambda_.1} parent=5 // pred_check_branch
      %990 = sbr.rel (%p988) target = $region40
    $region39: #{_lambda_.1} parent=5 // pred_region
      %s991 = ssub.s32 %s9, 2
      // Predicated region
      $region41: #{_lambda_.1} parent=39 // pred_check
        %p992 = pneg %p106
      $region42: #{_lambda_.1} parent=39 // pred_check_branch
        %994 = sbr.rel (%p992) target = $region44
      $region43: #{_lambda_.1} parent=39 // pred_region
        %p995 = scmp.lt.s32.totalorder %s15, 1
        %s996 = scalar_select %p995, %s15, 1
        %s997 = smul.addr %s996, 8
        %s998 = scalar_lea.vmem %s3, %s997
      $region44: #{_lambda_.1} parent=39 // pred_fallthru
        _
    $region40: #{_lambda_.1} parent=5 // pred_fallthru
      _
  $region6: #{_lambda_.1} parent=0 // loop_footer
    %s13 = sadd.s32 1, %s9
  $region7: #{_lambda_.1} parent=0 // loop_footer_branch
    %8 = sbr.rel target = $region3
  $region8: #{_lambda_.1} parent=0 // loop_exit
    _

</llo_original>
